<compile_context>
chip_gen: v6e
topology: v6e:2x2x1
jax: 0.10.0
libtpu: 0.0.40
codegen_flags: <defaults>
</compile_context>

<pallas_src>
import jax
import jax.numpy as jnp
from jax.experimental import pallas as pl
from jax.experimental.pallas import tpu as pltpu

C_IN = 512   # encoder channels
C_MID = 512  # conv_1 output channels
C_OUT = 64   # conv_2 output channels
HW = 49      # 7 * 7 spatial positions (fixed by Linear(49, 32))
D_OUT = 32   # fc_encoder output features


def _choose_b_tile(bs: int) -> int:
    """Batch elements fused into one grid step (lane dim = b_tile * 49)."""
    if bs <= 4:
        return bs            # whole batch in one step for small batches
    # Otherwise: smallest divisor >= 3 (>=147 lanes per step) while keeping
    # >= 2 grid steps so megacore chips (v7x) can shard the batch.
    for t in range(3, bs):
        if bs % t == 0:
            return t
    return bs                # prime / awkward batch: one big step


def keymodel_kernel(x_ref, w1_ref, b1_ref, w2_ref, b2_ref, wfc_ref, bfc_ref,
                    o_ref):
    # x_ref block: (1, C_IN, b_tile*HW) bf16; weights resident every step.
    x = x_ref[0]                                        # (512, b_tile*49) bf16

    # conv_1 (1x1): bf16 MXU matmul, f32 accumulate, f32 bias add.
    y1 = jnp.dot(w1_ref[...], x,
                 preferred_element_type=jnp.float32) + b1_ref[...]

    # conv_2 (1x1): cast activations back to bf16 for the MXU, f32 accumulate.
    y2 = jnp.dot(w2_ref[...], y1.astype(jnp.bfloat16),
                 preferred_element_type=jnp.float32) + b2_ref[...]

    # fc_encoder: block-diagonal weight makes this one lane-dense 2-D matmul
    # (64, b_tile*49) @ (b_tile*49, b_tile*32); tiny, kept in f32.
    out = jnp.dot(y2, wfc_ref[...],
                  preferred_element_type=jnp.float32) + bfc_ref[...]

    o_ref[0] = out.astype(o_ref.dtype)                  # (64, b_tile*32)


def keymodel_forward(x_nchw, params, *, b_tile=None):
    """x_nchw: (bs, 512, 7, 7) float32 -> (bs, 64, 32) float32."""
    bs = x_nchw.shape[0]
    if b_tile is None:
        b_tile = _choose_b_tile(bs)
    assert bs % b_tile == 0, "b_tile must divide the batch size"
    nt = bs // b_tile
    n_lanes = b_tile * HW
    n_out_lanes = b_tile * D_OUT

    w1, b1, w2, b2, wfc, bfc = params

    # ---- wrapper glue (plain JAX, outside the kernel) ----
    # x: (bs,512,7,7) -> (nt, 512, b_tile*49): channels on sublanes,
    # batch*spatial packed into the lane dimension. Cast to bf16 (half DMA).
    x = x_nchw.reshape(nt, b_tile, C_IN, HW).transpose(0, 2, 1, 3)
    x = x.reshape(nt, C_IN, n_lanes).astype(jnp.bfloat16)

    w1_b = w1.astype(jnp.bfloat16)                       # (512, 512)
    w2_b = w2.astype(jnp.bfloat16)                       # (64, 512)
    b1_2d = b1.reshape(C_MID, 1).astype(jnp.float32)
    b2_2d = b2.reshape(C_OUT, 1).astype(jnp.float32)
    # fc as block-diagonal kron(I_b, wfc^T): (b_tile*49, b_tile*32), f32.
    wfc_blk = jnp.kron(jnp.eye(b_tile, dtype=jnp.float32),
                       wfc.T.astype(jnp.float32))
    bfc_blk = jnp.tile(bfc.astype(jnp.float32), b_tile).reshape(1, n_out_lanes)

    flops = int(bs * (2 * C_MID * C_IN * HW + 2 * C_OUT * C_MID * HW)
                + nt * 2 * C_OUT * n_lanes * n_out_lanes)
    bytes_accessed = int(w1_b.size * 2 + w2_b.size * 2 + wfc_blk.size * 4
                         + b1_2d.size * 4 + b2_2d.size * 4 + bfc_blk.size * 4
                         + x.size * 2 + bs * C_OUT * D_OUT * 4)

    full = lambda shape: pl.BlockSpec(shape, lambda t: tuple(0 for _ in shape))

    out = pl.pallas_call(
        keymodel_kernel,
        out_shape=jax.ShapeDtypeStruct((nt, C_OUT, n_out_lanes), jnp.float32),
        grid_spec=pltpu.PrefetchScalarGridSpec(
            num_scalar_prefetch=0,
            grid=(nt,),
            in_specs=[
                pl.BlockSpec((1, C_IN, n_lanes), lambda t: (t, 0, 0)),  # x
                full((C_MID, C_IN)),                                    # w1
                full((C_MID, 1)),                                       # b1
                full((C_OUT, C_MID)),                                   # w2
                full((C_OUT, 1)),                                       # b2
                full((n_lanes, n_out_lanes)),                           # wfc blk
                full((1, n_out_lanes)),                                 # bfc blk
            ],
            out_specs=pl.BlockSpec((1, C_OUT, n_out_lanes),
                                   lambda t: (t, 0, 0)),
        ),
        compiler_params=pltpu.CompilerParams(
            dimension_semantics=("parallel",)),
        cost_estimate=pl.CostEstimate(flops=flops, transcendentals=0,
                                      bytes_accessed=bytes_accessed),
    )(x, w1_b, b1_2d, w2_b, b2_2d, wfc_blk, bfc_blk)

    # (nt, 64, b_tile*32) -> (bs, 64, 32)  (cheap wrapper-side layout fix).
    out = out.reshape(nt, C_OUT, b_tile, D_OUT).transpose(0, 2, 1, 3)
    return out.reshape(bs, C_OUT, D_OUT)


def init_params(key):
    k1, k2, k3, k4, k5, k6 = jax.random.split(key, 6)
    w1 = jax.random.normal(k1, (C_MID, C_IN), jnp.float32) * 0.02
    b1 = jax.random.normal(k2, (C_MID,), jnp.float32) * 0.02
    w2 = jax.random.normal(k3, (C_OUT, C_MID), jnp.float32) * 0.02
    b2 = jax.random.normal(k4, (C_OUT,), jnp.float32) * 0.02
    wfc = jax.random.normal(k5, (D_OUT, HW), jnp.float32) * 0.02
    bfc = jax.random.normal(k6, (D_OUT,), jnp.float32) * 0.02
    return (w1, b1, w2, b2, wfc, bfc)


def reference_forward(x_nchw, params):
    """Pure-JAX f32 reference matching the PyTorch semantics."""
    w1, b1, w2, b2, wfc, bfc = params
    bs = x_nchw.shape[0]
    x = x_nchw.reshape(bs, C_IN, HW)
    y1 = jnp.einsum("oc,bcs->bos", w1, x) + b1[None, :, None]
    y2 = jnp.einsum("oc,bcs->bos", w2, y1) + b2[None, :, None]
    out = jnp.einsum("bos,fs->bof", y2, wfc) + bfc[None, None, :]
    return out


if __name__ == "__main__":
    key = jax.random.PRNGKey(0)
    kx, kp = jax.random.split(key)

    # Input: (bs=2, 512, 7, 7) -- channels/spatial fixed by the module.
    x = jax.random.normal(kx, (2, C_IN, 7, 7), jnp.float32)
    params = init_params(kp)

    out = keymodel_forward(x, params)
    out = jax.block_until_ready(out)

    ref = reference_forward(x, params)
    assert out.shape == (2, C_OUT, D_OUT)
    # bf16 matmul operands with f32 accumulation: slightly looser tolerance
    # than pure f32, still far inside it in practice.
    assert jnp.allclose(out, ref, atol=2e-3, rtol=2e-3)

    print("KERNEL_OK")
</pallas_src>

<mosaic_0001>
module attributes {stable_mosaic.version = 11 : i64} {
  func.func @keymodel_kernel(%arg0: i32, %arg1: memref<1x512x98xbf16, #tpu.memory_space<vmem>>, %arg2: memref<512x512xbf16, #tpu.memory_space<vmem>>, %arg3: memref<512x1xf32, #tpu.memory_space<vmem>>, %arg4: memref<64x512xbf16, #tpu.memory_space<vmem>>, %arg5: memref<64x1xf32, #tpu.memory_space<vmem>>, %arg6: memref<98x64xf32, #tpu.memory_space<vmem>>, %arg7: memref<1x64xf32, #tpu.memory_space<vmem>>, %arg8: memref<1x64x64xf32, #tpu.memory_space<vmem>>) attributes {dimension_semantics = [#tpu.dimension_semantics<parallel>], iteration_bounds = array<i64: 1>, scalar_prefetch = 0 : i64, scratch_operands = 0 : i64, tpu.core_type = #tpu.core_type<tc>, window_params = [{transform_indices = @transform_0, window_bounds = array<i64: 1, 512, 98>}, {pipeline_mode = #tpu.pipeline_mode<synchronous>, transform_indices = @transform_1, window_bounds = array<i64: 512, 512>}, {pipeline_mode = #tpu.pipeline_mode<synchronous>, transform_indices = @transform_2, window_bounds = array<i64: 512, 1>}, {pipeline_mode = #tpu.pipeline_mode<synchronous>, transform_indices = @transform_3, window_bounds = array<i64: 64, 512>}, {pipeline_mode = #tpu.pipeline_mode<synchronous>, transform_indices = @transform_4, window_bounds = array<i64: 64, 1>}, {pipeline_mode = #tpu.pipeline_mode<synchronous>, transform_indices = @transform_5, window_bounds = array<i64: 98, 64>}, {pipeline_mode = #tpu.pipeline_mode<synchronous>, transform_indices = @transform_6, window_bounds = array<i64: 1, 64>}, {transform_indices = @transform_7, window_bounds = array<i64: 1, 64, 64>}]} {
    %c0 = arith.constant 0 : index
    %c0_0 = arith.constant 0 : index
    %c0_1 = arith.constant 0 : index
    %0 = vector.load %arg1[%c0, %c0_0, %c0_1] : memref<1x512x98xbf16, #tpu.memory_space<vmem>>, vector<1x512x98xbf16>
    %1 = vector.shape_cast %0 : vector<1x512x98xbf16> to vector<512x98xbf16>
    %c0_2 = arith.constant 0 : index
    %c0_3 = arith.constant 0 : index
    %2 = vector.load %arg2[%c0_2, %c0_3] : memref<512x512xbf16, #tpu.memory_space<vmem>>, vector<512x512xbf16>
    %cst = arith.constant dense<0.000000e+00> : vector<512x98xf32>
    %3 = tpu.matmul %2, %1, %cst {dimension_numbers = #tpu.dot_dimension_numbers<[1], [0], [0], [1], [0, 0, 1, 1], [], []>} : vector<512x512xbf16>, vector<512x98xbf16>, vector<512x98xf32> -> vector<512x98xf32>
    %c0_4 = arith.constant 0 : index
    %c0_5 = arith.constant 0 : index
    %4 = vector.load %arg3[%c0_4, %c0_5] : memref<512x1xf32, #tpu.memory_space<vmem>>, vector<512x1xf32>
    %5 = vector.broadcast %4 : vector<512x1xf32> to vector<512x98xf32>
    %6 = arith.addf %3, %5 : vector<512x98xf32>
    %c0_6 = arith.constant 0 : index
    %c0_7 = arith.constant 0 : index
    %7 = vector.load %arg4[%c0_6, %c0_7] : memref<64x512xbf16, #tpu.memory_space<vmem>>, vector<64x512xbf16>
    %8 = arith.truncf %6 : vector<512x98xf32> to vector<512x98xbf16>
    %cst_8 = arith.constant dense<0.000000e+00> : vector<64x98xf32>
    %9 = tpu.matmul %7, %8, %cst_8 {dimension_numbers = #tpu.dot_dimension_numbers<[1], [0], [0], [1], [0, 0, 1, 1], [], []>} : vector<64x512xbf16>, vector<512x98xbf16>, vector<64x98xf32> -> vector<64x98xf32>
    %c0_9 = arith.constant 0 : index
    %c0_10 = arith.constant 0 : index
    %10 = vector.load %arg5[%c0_9, %c0_10] : memref<64x1xf32, #tpu.memory_space<vmem>>, vector<64x1xf32>
    %11 = vector.broadcast %10 : vector<64x1xf32> to vector<64x98xf32>
    %12 = arith.addf %9, %11 : vector<64x98xf32>
    %c0_11 = arith.constant 0 : index
    %c0_12 = arith.constant 0 : index
    %13 = vector.load %arg6[%c0_11, %c0_12] : memref<98x64xf32, #tpu.memory_space<vmem>>, vector<98x64xf32>
    %cst_13 = arith.constant dense<0.000000e+00> : vector<64x64xf32>
    %14 = tpu.matmul %12, %13, %cst_13 {dimension_numbers = #tpu.dot_dimension_numbers<[1], [0], [0], [1], [0, 0, 1, 1], [], []>} : vector<64x98xf32>, vector<98x64xf32>, vector<64x64xf32> -> vector<64x64xf32>
    %c0_14 = arith.constant 0 : index
    %c0_15 = arith.constant 0 : index
    %15 = vector.load %arg7[%c0_14, %c0_15] : memref<1x64xf32, #tpu.memory_space<vmem>>, vector<1x64xf32>
    %16 = vector.broadcast %15 : vector<1x64xf32> to vector<64x64xf32>
    %17 = arith.addf %14, %16 : vector<64x64xf32>
    %c0_16 = arith.constant 0 : index
    %c0_17 = arith.constant 0 : index
    %c0_18 = arith.constant 0 : index
    %18 = vector.load %arg8[%c0_16, %c0_17, %c0_18] : memref<1x64x64xf32, #tpu.memory_space<vmem>>, vector<1x64x64xf32>
    %19 = vector.shape_cast %18 : vector<1x64x64xf32> to vector<64x64xf32>
    %20 = vector.shape_cast %17 : vector<64x64xf32> to vector<1x64x64xf32>
    tpu.vector_store %arg8[%c0_16, %c0_17, %c0_18], %20 {strides = array<i32>} : memref<1x64x64xf32, #tpu.memory_space<vmem>>, vector<1x64x64xf32>,
    return
  }
  func.func @transform_0(%arg0: i32) -> (i32, i32, i32) {
    %c0_i32 = arith.constant 0 : i32
    %c0_i32_0 = arith.constant 0 : i32
    %c0_i32_1 = arith.constant 0 : i32
    return %arg0, %c0_i32, %c0_i32_0 : i32, i32, i32
  }
  func.func @transform_1(%arg0: i32) -> (i32, i32) {
    %c0_i32 = arith.constant 0 : i32
    %c0_i32_0 = arith.constant 0 : i32
    %c0_i32_1 = arith.constant 0 : i32
    return %c0_i32, %c0_i32_0 : i32, i32
  }
  func.func @transform_2(%arg0: i32) -> (i32, i32) {
    %c0_i32 = arith.constant 0 : i32
    %c0_i32_0 = arith.constant 0 : i32
    %c0_i32_1 = arith.constant 0 : i32
    return %c0_i32, %c0_i32_0 : i32, i32
  }
  func.func @transform_3(%arg0: i32) -> (i32, i32) {
    %c0_i32 = arith.constant 0 : i32
    %c0_i32_0 = arith.constant 0 : i32
    %c0_i32_1 = arith.constant 0 : i32
    return %c0_i32, %c0_i32_0 : i32, i32
  }
  func.func @transform_4(%arg0: i32) -> (i32, i32) {
    %c0_i32 = arith.constant 0 : i32
    %c0_i32_0 = arith.constant 0 : i32
    %c0_i32_1 = arith.constant 0 : i32
    return %c0_i32, %c0_i32_0 : i32, i32
  }
  func.func @transform_5(%arg0: i32) -> (i32, i32) {
    %c0_i32 = arith.constant 0 : i32
    %c0_i32_0 = arith.constant 0 : i32
    %c0_i32_1 = arith.constant 0 : i32
    return %c0_i32, %c0_i32_0 : i32, i32
  }
  func.func @transform_6(%arg0: i32) -> (i32, i32) {
    %c0_i32 = arith.constant 0 : i32
    %c0_i32_0 = arith.constant 0 : i32
    %c0_i32_1 = arith.constant 0 : i32
    return %c0_i32, %c0_i32_0 : i32, i32
  }
  func.func @transform_7(%arg0: i32) -> (i32, i32, i32) {
    %c0_i32 = arith.constant 0 : i32
    %c0_i32_0 = arith.constant 0 : i32
    %c0_i32_1 = arith.constant 0 : i32
    return %arg0, %c0_i32, %c0_i32_0 : i32, i32, i32
  }
}

</mosaic_0001>

<llo_original>
// kernel: tpu_custom_call.1
$region0: #{tpu_custom_call.1}
  #allocation0 [shape = 'u32[]', space=smem, size = 0x4, offset = 0x4, fixed_abs, tag = 'smem constant byte address 0x4 - core index']
  #allocation1 [shape = 'u32[144,128]{1,0:T(1,128)}', space=vmem, size = 0x12000, scoped, tag = 'internal scratch']
  %s0 = inlined_call_operand.vmem [shape: bf16[1,512,98], index: 0, kind: input, shape index: {}]
  %s1 = inlined_call_operand.vmem [shape: bf16[512,512], index: 1, kind: input, shape index: {}]
  %s2 = inlined_call_operand.vmem [shape: f32[512,1], index: 2, kind: input, shape index: {}]
  %s3 = inlined_call_operand.vmem [shape: bf16[64,512], index: 3, kind: input, shape index: {}]
  %s4 = inlined_call_operand.vmem [shape: f32[64,1], index: 4, kind: input, shape index: {}]
  %s5 = inlined_call_operand.vmem [shape: f32[98,64], index: 5, kind: input, shape index: {}]
  %s6 = inlined_call_operand.vmem [shape: f32[1,64], index: 6, kind: input, shape index: {}]
  %s7 = inlined_call_operand.hbm [shape: f32[1,64,64], index: 7, kind: output, shape index: {}]
  %s8 = sld [smem:[#allocation0]]
  $region38: #{tpu_custom_call.1} parent=0
    _
  %s10 = ssub.s32 1, %s8
  %s11 = scalar_select 0, %s10, %s8
  $region1: #{tpu_custom_call.1} parent=0
    #allocation2 [shape = 'u8[32768]{0}', space=vmem, size = 0x8000, scoped, tag = 'output window, operand 0, single buffered']
    #allocation3 [shape = 's32[1]{0}', space=sflag, size = 0x4, scoped, tag = 'scoped memory for tpu_custom_call.1']
    %12 = vsyncpa [#allocation3], 0
    // Predicated region
    $region2: #{tpu_custom_call.1} parent=1 // pred_check
      _
    $region3: #{tpu_custom_call.1} parent=1 // pred_check_branch
      %14 = sbr.rel (0) target = $region5
    $region4: #{tpu_custom_call.1} parent=1 // pred_region
      _
    $region5: #{tpu_custom_call.1} parent=1 // pred_fallthru
      _
    // Predicated region
    $region6: #{tpu_custom_call.1} parent=1 // pred_check
      _
    $region7: #{tpu_custom_call.1} parent=1 // pred_check_branch
      %16 = sbr.rel (0) target = $region9
    $region8: #{tpu_custom_call.1} parent=1 // pred_region
      _
    $region9: #{tpu_custom_call.1} parent=1 // pred_fallthru
      _
    // Predicated region
    $region10: #{tpu_custom_call.1} parent=1 // pred_check
      _
    $region11: #{tpu_custom_call.1} parent=1 // pred_check_branch
      %18 = sbr.rel (0) target = $region13
    $region12: #{tpu_custom_call.1} parent=1 // pred_region
      _
    $region13: #{tpu_custom_call.1} parent=1 // pred_fallthru
      _
    // Predicated region
    $region14: #{tpu_custom_call.1} parent=1 // pred_check
      _
    $region15: #{tpu_custom_call.1} parent=1 // pred_check_branch
      %20 = sbr.rel (0) target = $region17
    $region16: #{tpu_custom_call.1} parent=1 // pred_region
      _
    $region17: #{tpu_custom_call.1} parent=1 // pred_fallthru
      _
    // Predicated region
    $region18: #{tpu_custom_call.1} parent=1 // pred_check
      _
    $region19: #{tpu_custom_call.1} parent=1 // pred_check_branch
      %22 = sbr.rel (0) target = $region21
    $region20: #{tpu_custom_call.1} parent=1 // pred_region
      _
    $region21: #{tpu_custom_call.1} parent=1 // pred_fallthru
      _
    // Predicated region
    $region22: #{tpu_custom_call.1} parent=1 // pred_check
      _
    $region23: #{tpu_custom_call.1} parent=1 // pred_check_branch
      %24 = sbr.rel (0) target = $region25
    $region24: #{tpu_custom_call.1} parent=1 // pred_region
      _
    $region25: #{tpu_custom_call.1} parent=1 // pred_fallthru
      _
    // Predicated region
    $region26: #{tpu_custom_call.1} parent=1 // pred_check
      _
    $region27: #{tpu_custom_call.1} parent=1 // pred_check_branch
      %26 = sbr.rel (0) target = $region29
    $region28: #{tpu_custom_call.1} parent=1 // pred_region
      _
    $region29: #{tpu_custom_call.1} parent=1 // pred_fallthru
      _
    %v28 = vld [vmem:[%s0] sm:$0xf]
    %v29 = vld [vmem:[%s0 + $0x4] sm:$0xf]
    %v30 = vld [vmem:[%s0 + $0x8] sm:$0xf]
    %v31 = vld [vmem:[%s0 + $0xc] sm:$0xf]
    %v32 = vld [vmem:[%s0 + $0x10] sm:$0xf]
    %v33 = vld [vmem:[%s0 + $0x14] sm:$0xf]
    %v34 = vld [vmem:[%s0 + $0x18] sm:$0xf]
    %v35 = vld [vmem:[%s0 + $0x1c] sm:$0xf]
    %v36 = vld [vmem:[%s0 + $0x20] sm:$0xf]
    %v37 = vld [vmem:[%s0 + $0x24] sm:$0xf]
    %v38 = vld [vmem:[%s0 + $0x28] sm:$0xf]
    %v39 = vld [vmem:[%s0 + $0x2c] sm:$0xf]
    %v40 = vld [vmem:[%s0 + $0x30] sm:$0xf]
    %v41 = vld [vmem:[%s0 + $0x34] sm:$0xf]
    %v42 = vld [vmem:[%s0 + $0x38] sm:$0xf]
    %v43 = vld [vmem:[%s0 + $0x3c] sm:$0xf]
    %v44 = vld [vmem:[%s0 + $0x40] sm:$0xf]
    %v45 = vld [vmem:[%s0 + $0x44] sm:$0xf]
    %v46 = vld [vmem:[%s0 + $0x48] sm:$0xf]
    %v47 = vld [vmem:[%s0 + $0x4c] sm:$0xf]
    %v48 = vld [vmem:[%s0 + $0x50] sm:$0xf]
    %v49 = vld [vmem:[%s0 + $0x54] sm:$0xf]
    %v50 = vld [vmem:[%s0 + $0x58] sm:$0xf]
    %v51 = vld [vmem:[%s0 + $0x5c] sm:$0xf]
    %v52 = vld [vmem:[%s0 + $0x60] sm:$0xf]
    %v53 = vld [vmem:[%s0 + $0x64] sm:$0xf]
    %v54 = vld [vmem:[%s0 + $0x68] sm:$0xf]
    %v55 = vld [vmem:[%s0 + $0x6c] sm:$0xf]
    %v56 = vld [vmem:[%s0 + $0x70] sm:$0xf]
    %v57 = vld [vmem:[%s0 + $0x74] sm:$0xf]
    %v58 = vld [vmem:[%s0 + $0x78] sm:$0xf]
    %v59 = vld [vmem:[%s0 + $0x7c] sm:$0xf]
    %v60 = vld [vmem:[%s0 + $0x80] sm:$0xf]
    %v61 = vld [vmem:[%s0 + $0x84] sm:$0xf]
    %v62 = vld [vmem:[%s0 + $0x88] sm:$0xf]
    %v63 = vld [vmem:[%s0 + $0x8c] sm:$0xf]
    %v64 = vld [vmem:[%s0 + $0x90] sm:$0xf]
    %v65 = vld [vmem:[%s0 + $0x94] sm:$0xf]
    %v66 = vld [vmem:[%s0 + $0x98] sm:$0xf]
    %v67 = vld [vmem:[%s0 + $0x9c] sm:$0xf]
    %v68 = vld [vmem:[%s0 + $0xa0] sm:$0xf]
    %v69 = vld [vmem:[%s0 + $0xa4] sm:$0xf]
    %v70 = vld [vmem:[%s0 + $0xa8] sm:$0xf]
    %v71 = vld [vmem:[%s0 + $0xac] sm:$0xf]
    %v72 = vld [vmem:[%s0 + $0xb0] sm:$0xf]
    %v73 = vld [vmem:[%s0 + $0xb4] sm:$0xf]
    %v74 = vld [vmem:[%s0 + $0xb8] sm:$0xf]
    %v75 = vld [vmem:[%s0 + $0xbc] sm:$0xf]
    %v76 = vld [vmem:[%s0 + $0xc0] sm:$0xf]
    %v77 = vld [vmem:[%s0 + $0xc4] sm:$0xf]
    %v78 = vld [vmem:[%s0 + $0xc8] sm:$0xf]
    %v79 = vld [vmem:[%s0 + $0xcc] sm:$0xf]
    %v80 = vld [vmem:[%s0 + $0xd0] sm:$0xf]
    %v81 = vld [vmem:[%s0 + $0xd4] sm:$0xf]
    %v82 = vld [vmem:[%s0 + $0xd8] sm:$0xf]
    %v83 = vld [vmem:[%s0 + $0xdc] sm:$0xf]
    %v84 = vld [vmem:[%s0 + $0xe0] sm:$0xf]
    %v85 = vld [vmem:[%s0 + $0xe4] sm:$0xf]
    %v86 = vld [vmem:[%s0 + $0xe8] sm:$0xf]
    %v87 = vld [vmem:[%s0 + $0xec] sm:$0xf]
    %v88 = vld [vmem:[%s0 + $0xf0] sm:$0xf]
    %v89 = vld [vmem:[%s0 + $0xf4] sm:$0xf]
    %v90 = vld [vmem:[%s0 + $0xf8] sm:$0xf]
    %v91 = vld [vmem:[%s0 + $0xfc] sm:$0xf]
    %v92 = vld [vmem:[%s1] sm:$0xff]
    %v93 = vld [vmem:[%s1 + $0x8] sm:$0xff]
    %v94 = vld [vmem:[%s1 + $0x10] sm:$0xff]
    %v95 = vld [vmem:[%s1 + $0x18] sm:$0xff]
    %v96 = vld [vmem:[%s1 + $0x20] sm:$0xff]
    %v97 = vld [vmem:[%s1 + $0x28] sm:$0xff]
    %v98 = vld [vmem:[%s1 + $0x30] sm:$0xff]
    %v99 = vld [vmem:[%s1 + $0x38] sm:$0xff]
    %v100 = vld [vmem:[%s1 + $0x40] sm:$0xff]
    %v101 = vld [vmem:[%s1 + $0x48] sm:$0xff]
    %v102 = vld [vmem:[%s1 + $0x50] sm:$0xff]
    %v103 = vld [vmem:[%s1 + $0x58] sm:$0xff]
    %v104 = vld [vmem:[%s1 + $0x60] sm:$0xff]
    %v105 = vld [vmem:[%s1 + $0x68] sm:$0xff]
    %v106 = vld [vmem:[%s1 + $0x70] sm:$0xff]
    %v107 = vld [vmem:[%s1 + $0x78] sm:$0xff]
    %v108 = vld [vmem:[%s1 + $0x80] sm:$0xff]
    %v109 = vld [vmem:[%s1 + $0x88] sm:$0xff]
    %v110 = vld [vmem:[%s1 + $0x90] sm:$0xff]
    %v111 = vld [vmem:[%s1 + $0x98] sm:$0xff]
    %v112 = vld [vmem:[%s1 + $0xa0] sm:$0xff]
    %v113 = vld [vmem:[%s1 + $0xa8] sm:$0xff]
    %v114 = vld [vmem:[%s1 + $0xb0] sm:$0xff]
    %v115 = vld [vmem:[%s1 + $0xb8] sm:$0xff]
    %v116 = vld [vmem:[%s1 + $0xc0] sm:$0xff]
    %v117 = vld [vmem:[%s1 + $0xc8] sm:$0xff]
    %v118 = vld [vmem:[%s1 + $0xd0] sm:$0xff]
    %v119 = vld [vmem:[%s1 + $0xd8] sm:$0xff]
    %v120 = vld [vmem:[%s1 + $0xe0] sm:$0xff]
    %v121 = vld [vmem:[%s1 + $0xe8] sm:$0xff]
    %v122 = vld [vmem:[%s1 + $0xf0] sm:$0xff]
    %v123 = vld [vmem:[%s1 + $0xf8] sm:$0xff]
    %v124 = vld [vmem:[%s1 + $0x100] sm:$0xff]
    %v125 = vld [vmem:[%s1 + $0x108] sm:$0xff]
    %v126 = vld [vmem:[%s1 + $0x110] sm:$0xff]
    %v127 = vld [vmem:[%s1 + $0x118] sm:$0xff]
    %v128 = vld [vmem:[%s1 + $0x120] sm:$0xff]
    %v129 = vld [vmem:[%s1 + $0x128] sm:$0xff]
    %v130 = vld [vmem:[%s1 + $0x130] sm:$0xff]
    %v131 = vld [vmem:[%s1 + $0x138] sm:$0xff]
    %v132 = vld [vmem:[%s1 + $0x140] sm:$0xff]
    %v133 = vld [vmem:[%s1 + $0x148] sm:$0xff]
    %v134 = vld [vmem:[%s1 + $0x150] sm:$0xff]
    %v135 = vld [vmem:[%s1 + $0x158] sm:$0xff]
    %v136 = vld [vmem:[%s1 + $0x160] sm:$0xff]
    %v137 = vld [vmem:[%s1 + $0x168] sm:$0xff]
    %v138 = vld [vmem:[%s1 + $0x170] sm:$0xff]
    %v139 = vld [vmem:[%s1 + $0x178] sm:$0xff]
    %v140 = vld [vmem:[%s1 + $0x180] sm:$0xff]
    %v141 = vld [vmem:[%s1 + $0x188] sm:$0xff]
    %v142 = vld [vmem:[%s1 + $0x190] sm:$0xff]
    %v143 = vld [vmem:[%s1 + $0x198] sm:$0xff]
    %v144 = vld [vmem:[%s1 + $0x1a0] sm:$0xff]
    %v145 = vld [vmem:[%s1 + $0x1a8] sm:$0xff]
    %v146 = vld [vmem:[%s1 + $0x1b0] sm:$0xff]
    %v147 = vld [vmem:[%s1 + $0x1b8] sm:$0xff]
    %v148 = vld [vmem:[%s1 + $0x1c0] sm:$0xff]
    %v149 = vld [vmem:[%s1 + $0x1c8] sm:$0xff]
    %v150 = vld [vmem:[%s1 + $0x1d0] sm:$0xff]
    %v151 = vld [vmem:[%s1 + $0x1d8] sm:$0xff]
    %v152 = vld [vmem:[%s1 + $0x1e0] sm:$0xff]
    %v153 = vld [vmem:[%s1 + $0x1e8] sm:$0xff]
    %v154 = vld [vmem:[%s1 + $0x1f0] sm:$0xff]
    %v155 = vld [vmem:[%s1 + $0x1f8] sm:$0xff]
    %v156 = vld [vmem:[%s1 + $0x200] sm:$0xff]
    %v157 = vld [vmem:[%s1 + $0x208] sm:$0xff]
    %v158 = vld [vmem:[%s1 + $0x210] sm:$0xff]
    %v159 = vld [vmem:[%s1 + $0x218] sm:$0xff]
    %v160 = vld [vmem:[%s1 + $0x220] sm:$0xff]
    %v161 = vld [vmem:[%s1 + $0x228] sm:$0xff]
    %v162 = vld [vmem:[%s1 + $0x230] sm:$0xff]
    %v163 = vld [vmem:[%s1 + $0x238] sm:$0xff]
    %v164 = vld [vmem:[%s1 + $0x240] sm:$0xff]
    %v165 = vld [vmem:[%s1 + $0x248] sm:$0xff]
    %v166 = vld [vmem:[%s1 + $0x250] sm:$0xff]
    %v167 = vld [vmem:[%s1 + $0x258] sm:$0xff]
    %v168 = vld [vmem:[%s1 + $0x260] sm:$0xff]
    %v169 = vld [vmem:[%s1 + $0x268] sm:$0xff]
    %v170 = vld [vmem:[%s1 + $0x270] sm:$0xff]
    %v171 = vld [vmem:[%s1 + $0x278] sm:$0xff]
    %v172 = vld [vmem:[%s1 + $0x280] sm:$0xff]
    %v173 = vld [vmem:[%s1 + $0x288] sm:$0xff]
    %v174 = vld [vmem:[%s1 + $0x290] sm:$0xff]
    %v175 = vld [vmem:[%s1 + $0x298] sm:$0xff]
    %v176 = vld [vmem:[%s1 + $0x2a0] sm:$0xff]
    %v177 = vld [vmem:[%s1 + $0x2a8] sm:$0xff]
    %v178 = vld [vmem:[%s1 + $0x2b0] sm:$0xff]
    %v179 = vld [vmem:[%s1 + $0x2b8] sm:$0xff]
    %v180 = vld [vmem:[%s1 + $0x2c0] sm:$0xff]
    %v181 = vld [vmem:[%s1 + $0x2c8] sm:$0xff]
    %v182 = vld [vmem:[%s1 + $0x2d0] sm:$0xff]
    %v183 = vld [vmem:[%s1 + $0x2d8] sm:$0xff]
    %v184 = vld [vmem:[%s1 + $0x2e0] sm:$0xff]
    %v185 = vld [vmem:[%s1 + $0x2e8] sm:$0xff]
    %v186 = vld [vmem:[%s1 + $0x2f0] sm:$0xff]
    %v187 = vld [vmem:[%s1 + $0x2f8] sm:$0xff]
    %v188 = vld [vmem:[%s1 + $0x300] sm:$0xff]
    %v189 = vld [vmem:[%s1 + $0x308] sm:$0xff]
    %v190 = vld [vmem:[%s1 + $0x310] sm:$0xff]
    %v191 = vld [vmem:[%s1 + $0x318] sm:$0xff]
    %v192 = vld [vmem:[%s1 + $0x320] sm:$0xff]
    %v193 = vld [vmem:[%s1 + $0x328] sm:$0xff]
    %v194 = vld [vmem:[%s1 + $0x330] sm:$0xff]
    %v195 = vld [vmem:[%s1 + $0x338] sm:$0xff]
    %v196 = vld [vmem:[%s1 + $0x340] sm:$0xff]
    %v197 = vld [vmem:[%s1 + $0x348] sm:$0xff]
    %v198 = vld [vmem:[%s1 + $0x350] sm:$0xff]
    %v199 = vld [vmem:[%s1 + $0x358] sm:$0xff]
    %v200 = vld [vmem:[%s1 + $0x360] sm:$0xff]
    %v201 = vld [vmem:[%s1 + $0x368] sm:$0xff]
    %v202 = vld [vmem:[%s1 + $0x370] sm:$0xff]
    %v203 = vld [vmem:[%s1 + $0x378] sm:$0xff]
    %v204 = vld [vmem:[%s1 + $0x380] sm:$0xff]
    %v205 = vld [vmem:[%s1 + $0x388] sm:$0xff]
    %v206 = vld [vmem:[%s1 + $0x390] sm:$0xff]
    %v207 = vld [vmem:[%s1 + $0x398] sm:$0xff]
    %v208 = vld [vmem:[%s1 + $0x3a0] sm:$0xff]
    %v209 = vld [vmem:[%s1 + $0x3a8] sm:$0xff]
    %v210 = vld [vmem:[%s1 + $0x3b0] sm:$0xff]
    %v211 = vld [vmem:[%s1 + $0x3b8] sm:$0xff]
    %v212 = vld [vmem:[%s1 + $0x3c0] sm:$0xff]
    %v213 = vld [vmem:[%s1 + $0x3c8] sm:$0xff]
    %v214 = vld [vmem:[%s1 + $0x3d0] sm:$0xff]
    %v215 = vld [vmem:[%s1 + $0x3d8] sm:$0xff]
    %v216 = vld [vmem:[%s1 + $0x3e0] sm:$0xff]
    %v217 = vld [vmem:[%s1 + $0x3e8] sm:$0xff]
    %v218 = vld [vmem:[%s1 + $0x3f0] sm:$0xff]
    %v219 = vld [vmem:[%s1 + $0x3f8] sm:$0xff]
    %v220 = vld [vmem:[%s2] sm:$0xff]
    %v221 = vld [vmem:[%s2 + $0x8] sm:$0xff]
    %v222 = vld [vmem:[%s2 + $0x10] sm:$0xff]
    %v223 = vld [vmem:[%s2 + $0x18] sm:$0xff]
    %v224 = vld [vmem:[%s2 + $0x20] sm:$0xff]
    %v225 = vld [vmem:[%s2 + $0x28] sm:$0xff]
    %v226 = vld [vmem:[%s2 + $0x30] sm:$0xff]
    %v227 = vld [vmem:[%s2 + $0x38] sm:$0xff]
    %v228 = vld [vmem:[%s2 + $0x40] sm:$0xff]
    %v229 = vld [vmem:[%s2 + $0x48] sm:$0xff]
    %v230 = vld [vmem:[%s2 + $0x50] sm:$0xff]
    %v231 = vld [vmem:[%s2 + $0x58] sm:$0xff]
    %v232 = vld [vmem:[%s2 + $0x60] sm:$0xff]
    %v233 = vld [vmem:[%s2 + $0x68] sm:$0xff]
    %v234 = vld [vmem:[%s2 + $0x70] sm:$0xff]
    %v235 = vld [vmem:[%s2 + $0x78] sm:$0xff]
    %v236 = vld [vmem:[%s2 + $0x80] sm:$0xff]
    %v237 = vld [vmem:[%s2 + $0x88] sm:$0xff]
    %v238 = vld [vmem:[%s2 + $0x90] sm:$0xff]
    %v239 = vld [vmem:[%s2 + $0x98] sm:$0xff]
    %v240 = vld [vmem:[%s2 + $0xa0] sm:$0xff]
    %v241 = vld [vmem:[%s2 + $0xa8] sm:$0xff]
    %v242 = vld [vmem:[%s2 + $0xb0] sm:$0xff]
    %v243 = vld [vmem:[%s2 + $0xb8] sm:$0xff]
    %v244 = vld [vmem:[%s2 + $0xc0] sm:$0xff]
    %v245 = vld [vmem:[%s2 + $0xc8] sm:$0xff]
    %v246 = vld [vmem:[%s2 + $0xd0] sm:$0xff]
    %v247 = vld [vmem:[%s2 + $0xd8] sm:$0xff]
    %v248 = vld [vmem:[%s2 + $0xe0] sm:$0xff]
    %v249 = vld [vmem:[%s2 + $0xe8] sm:$0xff]
    %v250 = vld [vmem:[%s2 + $0xf0] sm:$0xff]
    %v251 = vld [vmem:[%s2 + $0xf8] sm:$0xff]
    %v252 = vld [vmem:[%s2 + $0x100] sm:$0xff]
    %v253 = vld [vmem:[%s2 + $0x108] sm:$0xff]
    %v254 = vld [vmem:[%s2 + $0x110] sm:$0xff]
    %v255 = vld [vmem:[%s2 + $0x118] sm:$0xff]
    %v256 = vld [vmem:[%s2 + $0x120] sm:$0xff]
    %v257 = vld [vmem:[%s2 + $0x128] sm:$0xff]
    %v258 = vld [vmem:[%s2 + $0x130] sm:$0xff]
    %v259 = vld [vmem:[%s2 + $0x138] sm:$0xff]
    %v260 = vld [vmem:[%s2 + $0x140] sm:$0xff]
    %v261 = vld [vmem:[%s2 + $0x148] sm:$0xff]
    %v262 = vld [vmem:[%s2 + $0x150] sm:$0xff]
    %v263 = vld [vmem:[%s2 + $0x158] sm:$0xff]
    %v264 = vld [vmem:[%s2 + $0x160] sm:$0xff]
    %v265 = vld [vmem:[%s2 + $0x168] sm:$0xff]
    %v266 = vld [vmem:[%s2 + $0x170] sm:$0xff]
    %v267 = vld [vmem:[%s2 + $0x178] sm:$0xff]
    %v268 = vld [vmem:[%s2 + $0x180] sm:$0xff]
    %v269 = vld [vmem:[%s2 + $0x188] sm:$0xff]
    %v270 = vld [vmem:[%s2 + $0x190] sm:$0xff]
    %v271 = vld [vmem:[%s2 + $0x198] sm:$0xff]
    %v272 = vld [vmem:[%s2 + $0x1a0] sm:$0xff]
    %v273 = vld [vmem:[%s2 + $0x1a8] sm:$0xff]
    %v274 = vld [vmem:[%s2 + $0x1b0] sm:$0xff]
    %v275 = vld [vmem:[%s2 + $0x1b8] sm:$0xff]
    %v276 = vld [vmem:[%s2 + $0x1c0] sm:$0xff]
    %v277 = vld [vmem:[%s2 + $0x1c8] sm:$0xff]
    %v278 = vld [vmem:[%s2 + $0x1d0] sm:$0xff]
    %v279 = vld [vmem:[%s2 + $0x1d8] sm:$0xff]
    %v280 = vld [vmem:[%s2 + $0x1e0] sm:$0xff]
    %v281 = vld [vmem:[%s2 + $0x1e8] sm:$0xff]
    %v282 = vld [vmem:[%s2 + $0x1f0] sm:$0xff]
    %v283 = vld [vmem:[%s2 + $0x1f8] sm:$0xff]
    %285 = vset.pattern.permute.xlu0 0
    %286 = vperm.xlu0 %285, %v220
    %v287 = vpop.permute.xlu0 %286
    %290 = vset.pattern.permute.xlu0 0
    %291 = vperm.xlu0 %290, %v221
    %v292 = vpop.permute.xlu0 %291
    %295 = vset.pattern.permute.xlu0 0
    %296 = vperm.xlu0 %295, %v222
    %v297 = vpop.permute.xlu0 %296
    %300 = vset.pattern.permute.xlu0 0
    %301 = vperm.xlu0 %300, %v223
    %v302 = vpop.permute.xlu0 %301
    %305 = vset.pattern.permute.xlu0 0
    %306 = vperm.xlu0 %305, %v224
    %v307 = vpop.permute.xlu0 %306
    %310 = vset.pattern.permute.xlu0 0
    %311 = vperm.xlu0 %310, %v225
    %v312 = vpop.permute.xlu0 %311
    %315 = vset.pattern.permute.xlu0 0
    %316 = vperm.xlu0 %315, %v226
    %v317 = vpop.permute.xlu0 %316
    %320 = vset.pattern.permute.xlu0 0
    %321 = vperm.xlu0 %320, %v227
    %v322 = vpop.permute.xlu0 %321
    %325 = vset.pattern.permute.xlu0 0
    %326 = vperm.xlu0 %325, %v228
    %v327 = vpop.permute.xlu0 %326
    %330 = vset.pattern.permute.xlu0 0
    %331 = vperm.xlu0 %330, %v229
    %v332 = vpop.permute.xlu0 %331
    %335 = vset.pattern.permute.xlu0 0
    %336 = vperm.xlu0 %335, %v230
    %v337 = vpop.permute.xlu0 %336
    %340 = vset.pattern.permute.xlu0 0
    %341 = vperm.xlu0 %340, %v231
    %v342 = vpop.permute.xlu0 %341
    %345 = vset.pattern.permute.xlu0 0
    %346 = vperm.xlu0 %345, %v232
    %v347 = vpop.permute.xlu0 %346
    %350 = vset.pattern.permute.xlu0 0
    %351 = vperm.xlu0 %350, %v233
    %v352 = vpop.permute.xlu0 %351
    %355 = vset.pattern.permute.xlu0 0
    %356 = vperm.xlu0 %355, %v234
    %v357 = vpop.permute.xlu0 %356
    %360 = vset.pattern.permute.xlu0 0
    %361 = vperm.xlu0 %360, %v235
    %v362 = vpop.permute.xlu0 %361
    %365 = vset.pattern.permute.xlu0 0
    %366 = vperm.xlu0 %365, %v236
    %v367 = vpop.permute.xlu0 %366
    %370 = vset.pattern.permute.xlu0 0
    %371 = vperm.xlu0 %370, %v237
    %v372 = vpop.permute.xlu0 %371
    %375 = vset.pattern.permute.xlu0 0
    %376 = vperm.xlu0 %375, %v238
    %v377 = vpop.permute.xlu0 %376
    %380 = vset.pattern.permute.xlu0 0
    %381 = vperm.xlu0 %380, %v239
    %v382 = vpop.permute.xlu0 %381
    %385 = vset.pattern.permute.xlu0 0
    %386 = vperm.xlu0 %385, %v240
    %v387 = vpop.permute.xlu0 %386
    %390 = vset.pattern.permute.xlu0 0
    %391 = vperm.xlu0 %390, %v241
    %v392 = vpop.permute.xlu0 %391
    %395 = vset.pattern.permute.xlu0 0
    %396 = vperm.xlu0 %395, %v242
    %v397 = vpop.permute.xlu0 %396
    %400 = vset.pattern.permute.xlu0 0
    %401 = vperm.xlu0 %400, %v243
    %v402 = vpop.permute.xlu0 %401
    %405 = vset.pattern.permute.xlu0 0
    %406 = vperm.xlu0 %405, %v244
    %v407 = vpop.permute.xlu0 %406
    %410 = vset.pattern.permute.xlu0 0
    %411 = vperm.xlu0 %410, %v245
    %v412 = vpop.permute.xlu0 %411
    %415 = vset.pattern.permute.xlu0 0
    %416 = vperm.xlu0 %415, %v246
    %v417 = vpop.permute.xlu0 %416
    %420 = vset.pattern.permute.xlu0 0
    %421 = vperm.xlu0 %420, %v247
    %v422 = vpop.permute.xlu0 %421
    %425 = vset.pattern.permute.xlu0 0
    %426 = vperm.xlu0 %425, %v248
    %v427 = vpop.permute.xlu0 %426
    %430 = vset.pattern.permute.xlu0 0
    %431 = vperm.xlu0 %430, %v249
    %v432 = vpop.permute.xlu0 %431
    %435 = vset.pattern.permute.xlu0 0
    %436 = vperm.xlu0 %435, %v250
    %v437 = vpop.permute.xlu0 %436
    %440 = vset.pattern.permute.xlu0 0
    %441 = vperm.xlu0 %440, %v251
    %v442 = vpop.permute.xlu0 %441
    %445 = vset.pattern.permute.xlu0 0
    %446 = vperm.xlu0 %445, %v252
    %v447 = vpop.permute.xlu0 %446
    %450 = vset.pattern.permute.xlu0 0
    %451 = vperm.xlu0 %450, %v253
    %v452 = vpop.permute.xlu0 %451
    %455 = vset.pattern.permute.xlu0 0
    %456 = vperm.xlu0 %455, %v254
    %v457 = vpop.permute.xlu0 %456
    %460 = vset.pattern.permute.xlu0 0
    %461 = vperm.xlu0 %460, %v255
    %v462 = vpop.permute.xlu0 %461
    %465 = vset.pattern.permute.xlu0 0
    %466 = vperm.xlu0 %465, %v256
    %v467 = vpop.permute.xlu0 %466
    %470 = vset.pattern.permute.xlu0 0
    %471 = vperm.xlu0 %470, %v257
    %v472 = vpop.permute.xlu0 %471
    %475 = vset.pattern.permute.xlu0 0
    %476 = vperm.xlu0 %475, %v258
    %v477 = vpop.permute.xlu0 %476
    %480 = vset.pattern.permute.xlu0 0
    %481 = vperm.xlu0 %480, %v259
    %v482 = vpop.permute.xlu0 %481
    %485 = vset.pattern.permute.xlu0 0
    %486 = vperm.xlu0 %485, %v260
    %v487 = vpop.permute.xlu0 %486
    %490 = vset.pattern.permute.xlu0 0
    %491 = vperm.xlu0 %490, %v261
    %v492 = vpop.permute.xlu0 %491
    %495 = vset.pattern.permute.xlu0 0
    %496 = vperm.xlu0 %495, %v262
    %v497 = vpop.permute.xlu0 %496
    %500 = vset.pattern.permute.xlu0 0
    %501 = vperm.xlu0 %500, %v263
    %v502 = vpop.permute.xlu0 %501
    %505 = vset.pattern.permute.xlu0 0
    %506 = vperm.xlu0 %505, %v264
    %v507 = vpop.permute.xlu0 %506
    %510 = vset.pattern.permute.xlu0 0
    %511 = vperm.xlu0 %510, %v265
    %v512 = vpop.permute.xlu0 %511
    %515 = vset.pattern.permute.xlu0 0
    %516 = vperm.xlu0 %515, %v266
    %v517 = vpop.permute.xlu0 %516
    %520 = vset.pattern.permute.xlu0 0
    %521 = vperm.xlu0 %520, %v267
    %v522 = vpop.permute.xlu0 %521
    %525 = vset.pattern.permute.xlu0 0
    %526 = vperm.xlu0 %525, %v268
    %v527 = vpop.permute.xlu0 %526
    %530 = vset.pattern.permute.xlu0 0
    %531 = vperm.xlu0 %530, %v269
    %v532 = vpop.permute.xlu0 %531
    %535 = vset.pattern.permute.xlu0 0
    %536 = vperm.xlu0 %535, %v270
    %v537 = vpop.permute.xlu0 %536
    %540 = vset.pattern.permute.xlu0 0
    %541 = vperm.xlu0 %540, %v271
    %v542 = vpop.permute.xlu0 %541
    %545 = vset.pattern.permute.xlu0 0
    %546 = vperm.xlu0 %545, %v272
    %v547 = vpop.permute.xlu0 %546
    %550 = vset.pattern.permute.xlu0 0
    %551 = vperm.xlu0 %550, %v273
    %v552 = vpop.permute.xlu0 %551
    %555 = vset.pattern.permute.xlu0 0
    %556 = vperm.xlu0 %555, %v274
    %v557 = vpop.permute.xlu0 %556
    %560 = vset.pattern.permute.xlu0 0
    %561 = vperm.xlu0 %560, %v275
    %v562 = vpop.permute.xlu0 %561
    %565 = vset.pattern.permute.xlu0 0
    %566 = vperm.xlu0 %565, %v276
    %v567 = vpop.permute.xlu0 %566
    %570 = vset.pattern.permute.xlu0 0
    %571 = vperm.xlu0 %570, %v277
    %v572 = vpop.permute.xlu0 %571
    %575 = vset.pattern.permute.xlu0 0
    %576 = vperm.xlu0 %575, %v278
    %v577 = vpop.permute.xlu0 %576
    %580 = vset.pattern.permute.xlu0 0
    %581 = vperm.xlu0 %580, %v279
    %v582 = vpop.permute.xlu0 %581
    %585 = vset.pattern.permute.xlu0 0
    %586 = vperm.xlu0 %585, %v280
    %v587 = vpop.permute.xlu0 %586
    %590 = vset.pattern.permute.xlu0 0
    %591 = vperm.xlu0 %590, %v281
    %v592 = vpop.permute.xlu0 %591
    %595 = vset.pattern.permute.xlu0 0
    %596 = vperm.xlu0 %595, %v282
    %v597 = vpop.permute.xlu0 %596
    %600 = vset.pattern.permute.xlu0 0
    %601 = vperm.xlu0 %600, %v283
    %v602 = vpop.permute.xlu0 %601
    %v732 = vunpack.c.l.b16 %v92
    %v733 = vunpack.c.h.b16 %v92
    %v734 = vunpack.c.l.b16 %v93
    %v735 = vunpack.c.h.b16 %v93
    %v736 = vunpack.c.l.b16 %v94
    %v737 = vunpack.c.h.b16 %v94
    %v738 = vunpack.c.l.b16 %v95
    %v739 = vunpack.c.h.b16 %v95
    %v740 = vunpack.c.l.b16 %v96
    %v741 = vunpack.c.h.b16 %v96
    %v742 = vunpack.c.l.b16 %v97
    %v743 = vunpack.c.h.b16 %v97
    %v744 = vunpack.c.l.b16 %v98
    %v745 = vunpack.c.h.b16 %v98
    %v746 = vunpack.c.l.b16 %v99
    %v747 = vunpack.c.h.b16 %v99
    %v748 = vunpack.c.l.b16 %v100
    %v749 = vunpack.c.h.b16 %v100
    %v750 = vunpack.c.l.b16 %v101
    %v751 = vunpack.c.h.b16 %v101
    %v752 = vunpack.c.l.b16 %v102
    %v753 = vunpack.c.h.b16 %v102
    %v754 = vunpack.c.l.b16 %v103
    %v755 = vunpack.c.h.b16 %v103
    %v756 = vunpack.c.l.b16 %v104
    %v757 = vunpack.c.h.b16 %v104
    %v758 = vunpack.c.l.b16 %v105
    %v759 = vunpack.c.h.b16 %v105
    %v760 = vunpack.c.l.b16 %v106
    %v761 = vunpack.c.h.b16 %v106
    %v762 = vunpack.c.l.b16 %v107
    %v763 = vunpack.c.h.b16 %v107
    %v764 = vunpack.c.l.b16 %v108
    %v765 = vunpack.c.h.b16 %v108
    %v766 = vunpack.c.l.b16 %v109
    %v767 = vunpack.c.h.b16 %v109
    %v768 = vunpack.c.l.b16 %v110
    %v769 = vunpack.c.h.b16 %v110
    %v770 = vunpack.c.l.b16 %v111
    %v771 = vunpack.c.h.b16 %v111
    %v772 = vunpack.c.l.b16 %v112
    %v773 = vunpack.c.h.b16 %v112
    %v774 = vunpack.c.l.b16 %v113
    %v775 = vunpack.c.h.b16 %v113
    %v776 = vunpack.c.l.b16 %v114
    %v777 = vunpack.c.h.b16 %v114
    %v778 = vunpack.c.l.b16 %v115
    %v779 = vunpack.c.h.b16 %v115
    %v780 = vunpack.c.l.b16 %v116
    %v781 = vunpack.c.h.b16 %v116
    %v782 = vunpack.c.l.b16 %v117
    %v783 = vunpack.c.h.b16 %v117
    %v784 = vunpack.c.l.b16 %v118
    %v785 = vunpack.c.h.b16 %v118
    %v786 = vunpack.c.l.b16 %v119
    %v787 = vunpack.c.h.b16 %v119
    %v788 = vunpack.c.l.b16 %v120
    %v789 = vunpack.c.h.b16 %v120
    %v790 = vunpack.c.l.b16 %v121
    %v791 = vunpack.c.h.b16 %v121
    %v792 = vunpack.c.l.b16 %v122
    %v793 = vunpack.c.h.b16 %v122
    %v794 = vunpack.c.l.b16 %v123
    %v795 = vunpack.c.h.b16 %v123
    %v796 = vunpack.c.l.b16 %v124
    %v797 = vunpack.c.h.b16 %v124
    %v798 = vunpack.c.l.b16 %v125
    %v799 = vunpack.c.h.b16 %v125
    %v800 = vunpack.c.l.b16 %v126
    %v801 = vunpack.c.h.b16 %v126
    %v802 = vunpack.c.l.b16 %v127
    %v803 = vunpack.c.h.b16 %v127
    %v804 = vunpack.c.l.b16 %v128
    %v805 = vunpack.c.h.b16 %v128
    %v806 = vunpack.c.l.b16 %v129
    %v807 = vunpack.c.h.b16 %v129
    %v808 = vunpack.c.l.b16 %v130
    %v809 = vunpack.c.h.b16 %v130
    %v810 = vunpack.c.l.b16 %v131
    %v811 = vunpack.c.h.b16 %v131
    %v812 = vunpack.c.l.b16 %v132
    %v813 = vunpack.c.h.b16 %v132
    %v814 = vunpack.c.l.b16 %v133
    %v815 = vunpack.c.h.b16 %v133
    %v816 = vunpack.c.l.b16 %v134
    %v817 = vunpack.c.h.b16 %v134
    %v818 = vunpack.c.l.b16 %v135
    %v819 = vunpack.c.h.b16 %v135
    %v820 = vunpack.c.l.b16 %v136
    %v821 = vunpack.c.h.b16 %v136
    %v822 = vunpack.c.l.b16 %v137
    %v823 = vunpack.c.h.b16 %v137
    %v824 = vunpack.c.l.b16 %v138
    %v825 = vunpack.c.h.b16 %v138
    %v826 = vunpack.c.l.b16 %v139
    %v827 = vunpack.c.h.b16 %v139
    %v828 = vunpack.c.l.b16 %v140
    %v829 = vunpack.c.h.b16 %v140
    %v830 = vunpack.c.l.b16 %v141
    %v831 = vunpack.c.h.b16 %v141
    %v832 = vunpack.c.l.b16 %v142
    %v833 = vunpack.c.h.b16 %v142
    %v834 = vunpack.c.l.b16 %v143
    %v835 = vunpack.c.h.b16 %v143
    %v836 = vunpack.c.l.b16 %v144
    %v837 = vunpack.c.h.b16 %v144
    %v838 = vunpack.c.l.b16 %v145
    %v839 = vunpack.c.h.b16 %v145
    %v840 = vunpack.c.l.b16 %v146
    %v841 = vunpack.c.h.b16 %v146
    %v842 = vunpack.c.l.b16 %v147
    %v843 = vunpack.c.h.b16 %v147
    %v844 = vunpack.c.l.b16 %v148
    %v845 = vunpack.c.h.b16 %v148
    %v846 = vunpack.c.l.b16 %v149
    %v847 = vunpack.c.h.b16 %v149
    %v848 = vunpack.c.l.b16 %v150
    %v849 = vunpack.c.h.b16 %v150
    %v850 = vunpack.c.l.b16 %v151
    %v851 = vunpack.c.h.b16 %v151
    %v852 = vunpack.c.l.b16 %v152
    %v853 = vunpack.c.h.b16 %v152
    %v854 = vunpack.c.l.b16 %v153
    %v855 = vunpack.c.h.b16 %v153
    %v856 = vunpack.c.l.b16 %v154
    %v857 = vunpack.c.h.b16 %v154
    %v858 = vunpack.c.l.b16 %v155
    %v859 = vunpack.c.h.b16 %v155
    %v860 = vunpack.c.l.b16 %v156
    %v861 = vunpack.c.h.b16 %v156
    %v862 = vunpack.c.l.b16 %v157
    %v863 = vunpack.c.h.b16 %v157
    %v864 = vunpack.c.l.b16 %v158
    %v865 = vunpack.c.h.b16 %v158
    %v866 = vunpack.c.l.b16 %v159
    %v867 = vunpack.c.h.b16 %v159
    %v868 = vunpack.c.l.b16 %v160
    %v869 = vunpack.c.h.b16 %v160
    %v870 = vunpack.c.l.b16 %v161
    %v871 = vunpack.c.h.b16 %v161
    %v872 = vunpack.c.l.b16 %v162
    %v873 = vunpack.c.h.b16 %v162
    %v874 = vunpack.c.l.b16 %v163
    %v875 = vunpack.c.h.b16 %v163
    %v876 = vunpack.c.l.b16 %v164
    %v877 = vunpack.c.h.b16 %v164
    %v878 = vunpack.c.l.b16 %v165
    %v879 = vunpack.c.h.b16 %v165
    %v880 = vunpack.c.l.b16 %v166
    %v881 = vunpack.c.h.b16 %v166
    %v882 = vunpack.c.l.b16 %v167
    %v883 = vunpack.c.h.b16 %v167
    %v884 = vunpack.c.l.b16 %v168
    %v885 = vunpack.c.h.b16 %v168
    %v886 = vunpack.c.l.b16 %v169
    %v887 = vunpack.c.h.b16 %v169
    %v888 = vunpack.c.l.b16 %v170
    %v889 = vunpack.c.h.b16 %v170
    %v890 = vunpack.c.l.b16 %v171
    %v891 = vunpack.c.h.b16 %v171
    %v892 = vunpack.c.l.b16 %v172
    %v893 = vunpack.c.h.b16 %v172
    %v894 = vunpack.c.l.b16 %v173
    %v895 = vunpack.c.h.b16 %v173
    %v896 = vunpack.c.l.b16 %v174
    %v897 = vunpack.c.h.b16 %v174
    %v898 = vunpack.c.l.b16 %v175
    %v899 = vunpack.c.h.b16 %v175
    %v900 = vunpack.c.l.b16 %v176
    %v901 = vunpack.c.h.b16 %v176
    %v902 = vunpack.c.l.b16 %v177
    %v903 = vunpack.c.h.b16 %v177
    %v904 = vunpack.c.l.b16 %v178
    %v905 = vunpack.c.h.b16 %v178
    %v906 = vunpack.c.l.b16 %v179
    %v907 = vunpack.c.h.b16 %v179
    %v908 = vunpack.c.l.b16 %v180
    %v909 = vunpack.c.h.b16 %v180
    %v910 = vunpack.c.l.b16 %v181
    %v911 = vunpack.c.h.b16 %v181
    %v912 = vunpack.c.l.b16 %v182
    %v913 = vunpack.c.h.b16 %v182
    %v914 = vunpack.c.l.b16 %v183
    %v915 = vunpack.c.h.b16 %v183
    %v916 = vunpack.c.l.b16 %v184
    %v917 = vunpack.c.h.b16 %v184
    %v918 = vunpack.c.l.b16 %v185
    %v919 = vunpack.c.h.b16 %v185
    %v920 = vunpack.c.l.b16 %v186
    %v921 = vunpack.c.h.b16 %v186
    %v922 = vunpack.c.l.b16 %v187
    %v923 = vunpack.c.h.b16 %v187
    %v924 = vunpack.c.l.b16 %v188
    %v925 = vunpack.c.h.b16 %v188
    %v926 = vunpack.c.l.b16 %v189
    %v927 = vunpack.c.h.b16 %v189
    %v928 = vunpack.c.l.b16 %v190
    %v929 = vunpack.c.h.b16 %v190
    %v930 = vunpack.c.l.b16 %v191
    %v931 = vunpack.c.h.b16 %v191
    %v932 = vunpack.c.l.b16 %v192
    %v933 = vunpack.c.h.b16 %v192
    %v934 = vunpack.c.l.b16 %v193
    %v935 = vunpack.c.h.b16 %v193
    %v936 = vunpack.c.l.b16 %v194
    %v937 = vunpack.c.h.b16 %v194
    %v938 = vunpack.c.l.b16 %v195
    %v939 = vunpack.c.h.b16 %v195
    %v940 = vunpack.c.l.b16 %v196
    %v941 = vunpack.c.h.b16 %v196
    %v942 = vunpack.c.l.b16 %v197
    %v943 = vunpack.c.h.b16 %v197
    %v944 = vunpack.c.l.b16 %v198
    %v945 = vunpack.c.h.b16 %v198
    %v946 = vunpack.c.l.b16 %v199
    %v947 = vunpack.c.h.b16 %v199
    %v948 = vunpack.c.l.b16 %v200
    %v949 = vunpack.c.h.b16 %v200
    %v950 = vunpack.c.l.b16 %v201
    %v951 = vunpack.c.h.b16 %v201
    %v952 = vunpack.c.l.b16 %v202
    %v953 = vunpack.c.h.b16 %v202
    %v954 = vunpack.c.l.b16 %v203
    %v955 = vunpack.c.h.b16 %v203
    %v956 = vunpack.c.l.b16 %v204
    %v957 = vunpack.c.h.b16 %v204
    %v958 = vunpack.c.l.b16 %v205
    %v959 = vunpack.c.h.b16 %v205
    %v960 = vunpack.c.l.b16 %v206
    %v961 = vunpack.c.h.b16 %v206
    %v962 = vunpack.c.l.b16 %v207
    %v963 = vunpack.c.h.b16 %v207
    %v964 = vunpack.c.l.b16 %v208
    %v965 = vunpack.c.h.b16 %v208
    %v966 = vunpack.c.l.b16 %v209
    %v967 = vunpack.c.h.b16 %v209
    %v968 = vunpack.c.l.b16 %v210
    %v969 = vunpack.c.h.b16 %v210
    %v970 = vunpack.c.l.b16 %v211
    %v971 = vunpack.c.h.b16 %v211
    %v972 = vunpack.c.l.b16 %v212
    %v973 = vunpack.c.h.b16 %v212
    %v974 = vunpack.c.l.b16 %v213
    %v975 = vunpack.c.h.b16 %v213
    %v976 = vunpack.c.l.b16 %v214
    %v977 = vunpack.c.h.b16 %v214
    %v978 = vunpack.c.l.b16 %v215
    %v979 = vunpack.c.h.b16 %v215
    %v980 = vunpack.c.l.b16 %v216
    %v981 = vunpack.c.h.b16 %v216
    %v982 = vunpack.c.l.b16 %v217
    %v983 = vunpack.c.h.b16 %v217
    %v984 = vunpack.c.l.b16 %v218
    %v985 = vunpack.c.h.b16 %v218
    %v986 = vunpack.c.l.b16 %v219
    %v987 = vunpack.c.h.b16 %v219
    %v988 = vpack.c.b16 %v736, %v732
    %v989 = vpack.c.b16 %v737, %v733
    %v990 = vpack.c.b16 %v738, %v734
    %v991 = vpack.c.b16 %v739, %v735
    %v992 = vpack.c.b16 %v744, %v740
    %v993 = vpack.c.b16 %v745, %v741
    %v994 = vpack.c.b16 %v746, %v742
    %v995 = vpack.c.b16 %v747, %v743
    %v996 = vpack.c.b16 %v752, %v748
    %v997 = vpack.c.b16 %v753, %v749
    %v998 = vpack.c.b16 %v754, %v750
    %v999 = vpack.c.b16 %v755, %v751
    %v1000 = vpack.c.b16 %v760, %v756
    %v1001 = vpack.c.b16 %v761, %v757
    %v1002 = vpack.c.b16 %v762, %v758
    %v1003 = vpack.c.b16 %v763, %v759
    %v1004 = vpack.c.b16 %v768, %v764
    %v1005 = vpack.c.b16 %v769, %v765
    %v1006 = vpack.c.b16 %v770, %v766
    %v1007 = vpack.c.b16 %v771, %v767
    %v1008 = vpack.c.b16 %v776, %v772
    %v1009 = vpack.c.b16 %v777, %v773
    %v1010 = vpack.c.b16 %v778, %v774
    %v1011 = vpack.c.b16 %v779, %v775
    %v1012 = vpack.c.b16 %v784, %v780
    %v1013 = vpack.c.b16 %v785, %v781
    %v1014 = vpack.c.b16 %v786, %v782
    %v1015 = vpack.c.b16 %v787, %v783
    %v1016 = vpack.c.b16 %v792, %v788
    %v1017 = vpack.c.b16 %v793, %v789
    %v1018 = vpack.c.b16 %v794, %v790
    %v1019 = vpack.c.b16 %v795, %v791
    %v1020 = vpack.c.b16 %v800, %v796
    %v1021 = vpack.c.b16 %v801, %v797
    %v1022 = vpack.c.b16 %v802, %v798
    %v1023 = vpack.c.b16 %v803, %v799
    %v1024 = vpack.c.b16 %v808, %v804
    %v1025 = vpack.c.b16 %v809, %v805
    %v1026 = vpack.c.b16 %v810, %v806
    %v1027 = vpack.c.b16 %v811, %v807
    %v1028 = vpack.c.b16 %v816, %v812
    %v1029 = vpack.c.b16 %v817, %v813
    %v1030 = vpack.c.b16 %v818, %v814
    %v1031 = vpack.c.b16 %v819, %v815
    %v1032 = vpack.c.b16 %v824, %v820
    %v1033 = vpack.c.b16 %v825, %v821
    %v1034 = vpack.c.b16 %v826, %v822
    %v1035 = vpack.c.b16 %v827, %v823
    %v1036 = vpack.c.b16 %v832, %v828
    %v1037 = vpack.c.b16 %v833, %v829
    %v1038 = vpack.c.b16 %v834, %v830
    %v1039 = vpack.c.b16 %v835, %v831
    %v1040 = vpack.c.b16 %v840, %v836
    %v1041 = vpack.c.b16 %v841, %v837
    %v1042 = vpack.c.b16 %v842, %v838
    %v1043 = vpack.c.b16 %v843, %v839
    %v1044 = vpack.c.b16 %v848, %v844
    %v1045 = vpack.c.b16 %v849, %v845
    %v1046 = vpack.c.b16 %v850, %v846
    %v1047 = vpack.c.b16 %v851, %v847
    %v1048 = vpack.c.b16 %v856, %v852
    %v1049 = vpack.c.b16 %v857, %v853
    %v1050 = vpack.c.b16 %v858, %v854
    %v1051 = vpack.c.b16 %v859, %v855
    %v1052 = vpack.c.b16 %v864, %v860
    %v1053 = vpack.c.b16 %v865, %v861
    %v1054 = vpack.c.b16 %v866, %v862
    %v1055 = vpack.c.b16 %v867, %v863
    %v1056 = vpack.c.b16 %v872, %v868
    %v1057 = vpack.c.b16 %v873, %v869
    %v1058 = vpack.c.b16 %v874, %v870
    %v1059 = vpack.c.b16 %v875, %v871
    %v1060 = vpack.c.b16 %v880, %v876
    %v1061 = vpack.c.b16 %v881, %v877
    %v1062 = vpack.c.b16 %v882, %v878
    %v1063 = vpack.c.b16 %v883, %v879
    %v1064 = vpack.c.b16 %v888, %v884
    %v1065 = vpack.c.b16 %v889, %v885
    %v1066 = vpack.c.b16 %v890, %v886
    %v1067 = vpack.c.b16 %v891, %v887
    %v1068 = vpack.c.b16 %v896, %v892
    %v1069 = vpack.c.b16 %v897, %v893
    %v1070 = vpack.c.b16 %v898, %v894
    %v1071 = vpack.c.b16 %v899, %v895
    %v1072 = vpack.c.b16 %v904, %v900
    %v1073 = vpack.c.b16 %v905, %v901
    %v1074 = vpack.c.b16 %v906, %v902
    %v1075 = vpack.c.b16 %v907, %v903
    %v1076 = vpack.c.b16 %v912, %v908
    %v1077 = vpack.c.b16 %v913, %v909
    %v1078 = vpack.c.b16 %v914, %v910
    %v1079 = vpack.c.b16 %v915, %v911
    %v1080 = vpack.c.b16 %v920, %v916
    %v1081 = vpack.c.b16 %v921, %v917
    %v1082 = vpack.c.b16 %v922, %v918
    %v1083 = vpack.c.b16 %v923, %v919
    %v1084 = vpack.c.b16 %v928, %v924
    %v1085 = vpack.c.b16 %v929, %v925
    %v1086 = vpack.c.b16 %v930, %v926
    %v1087 = vpack.c.b16 %v931, %v927
    %v1088 = vpack.c.b16 %v936, %v932
    %v1089 = vpack.c.b16 %v937, %v933
    %v1090 = vpack.c.b16 %v938, %v934
    %v1091 = vpack.c.b16 %v939, %v935
    %v1092 = vpack.c.b16 %v944, %v940
    %v1093 = vpack.c.b16 %v945, %v941
    %v1094 = vpack.c.b16 %v946, %v942
    %v1095 = vpack.c.b16 %v947, %v943
    %v1096 = vpack.c.b16 %v952, %v948
    %v1097 = vpack.c.b16 %v953, %v949
    %v1098 = vpack.c.b16 %v954, %v950
    %v1099 = vpack.c.b16 %v955, %v951
    %v1100 = vpack.c.b16 %v960, %v956
    %v1101 = vpack.c.b16 %v961, %v957
    %v1102 = vpack.c.b16 %v962, %v958
    %v1103 = vpack.c.b16 %v963, %v959
    %v1104 = vpack.c.b16 %v968, %v964
    %v1105 = vpack.c.b16 %v969, %v965
    %v1106 = vpack.c.b16 %v970, %v966
    %v1107 = vpack.c.b16 %v971, %v967
    %v1108 = vpack.c.b16 %v976, %v972
    %v1109 = vpack.c.b16 %v977, %v973
    %v1110 = vpack.c.b16 %v978, %v974
    %v1111 = vpack.c.b16 %v979, %v975
    %v1112 = vpack.c.b16 %v984, %v980
    %v1113 = vpack.c.b16 %v985, %v981
    %v1114 = vpack.c.b16 %v986, %v982
    %v1115 = vpack.c.b16 %v987, %v983
    %v1308 = vunpack.c.l.b16 %v28
    %v1309 = vunpack.c.l.b16 %v29
    %v1310 = vunpack.c.l.b16 %v30
    %v1311 = vunpack.c.l.b16 %v31
    %v1312 = vunpack.c.l.b16 %v32
    %v1313 = vunpack.c.l.b16 %v33
    %v1314 = vunpack.c.l.b16 %v34
    %v1315 = vunpack.c.l.b16 %v35
    %v1316 = vunpack.c.l.b16 %v36
    %v1317 = vunpack.c.l.b16 %v37
    %v1318 = vunpack.c.l.b16 %v38
    %v1319 = vunpack.c.l.b16 %v39
    %v1320 = vunpack.c.l.b16 %v40
    %v1321 = vunpack.c.l.b16 %v41
    %v1322 = vunpack.c.l.b16 %v42
    %v1323 = vunpack.c.l.b16 %v43
    %v1324 = vunpack.c.l.b16 %v44
    %v1325 = vunpack.c.l.b16 %v45
    %v1326 = vunpack.c.l.b16 %v46
    %v1327 = vunpack.c.l.b16 %v47
    %v1328 = vunpack.c.l.b16 %v48
    %v1329 = vunpack.c.l.b16 %v49
    %v1330 = vunpack.c.l.b16 %v50
    %v1331 = vunpack.c.l.b16 %v51
    %v1332 = vunpack.c.l.b16 %v52
    %v1333 = vunpack.c.l.b16 %v53
    %v1334 = vunpack.c.l.b16 %v54
    %v1335 = vunpack.c.l.b16 %v55
    %v1336 = vunpack.c.l.b16 %v56
    %v1337 = vunpack.c.l.b16 %v57
    %v1338 = vunpack.c.l.b16 %v58
    %v1339 = vunpack.c.l.b16 %v59
    %v1340 = vunpack.c.l.b16 %v60
    %v1341 = vunpack.c.l.b16 %v61
    %v1342 = vunpack.c.l.b16 %v62
    %v1343 = vunpack.c.l.b16 %v63
    %v1344 = vunpack.c.l.b16 %v64
    %v1345 = vunpack.c.l.b16 %v65
    %v1346 = vunpack.c.l.b16 %v66
    %v1347 = vunpack.c.l.b16 %v67
    %v1348 = vunpack.c.l.b16 %v68
    %v1349 = vunpack.c.l.b16 %v69
    %v1350 = vunpack.c.l.b16 %v70
    %v1351 = vunpack.c.l.b16 %v71
    %v1352 = vunpack.c.l.b16 %v72
    %v1353 = vunpack.c.l.b16 %v73
    %v1354 = vunpack.c.l.b16 %v74
    %v1355 = vunpack.c.l.b16 %v75
    %v1356 = vunpack.c.l.b16 %v76
    %v1357 = vunpack.c.l.b16 %v77
    %v1358 = vunpack.c.l.b16 %v78
    %v1359 = vunpack.c.l.b16 %v79
    %v1360 = vunpack.c.l.b16 %v80
    %v1361 = vunpack.c.l.b16 %v81
    %v1362 = vunpack.c.l.b16 %v82
    %v1363 = vunpack.c.l.b16 %v83
    %v1364 = vunpack.c.l.b16 %v84
    %v1365 = vunpack.c.l.b16 %v85
    %v1366 = vunpack.c.l.b16 %v86
    %v1367 = vunpack.c.l.b16 %v87
    %v1368 = vunpack.c.l.b16 %v88
    %v1369 = vunpack.c.l.b16 %v89
    %v1370 = vunpack.c.l.b16 %v90
    %v1371 = vunpack.c.l.b16 %v91
    %v1372 = vpack.c.b16 %v1309, %v1308
    %v1373 = vpack.c.b16 %v1311, %v1310
    %v1374 = vpack.c.b16 %v1313, %v1312
    %v1375 = vpack.c.b16 %v1315, %v1314
    %v1376 = vpack.c.b16 %v1317, %v1316
    %v1377 = vpack.c.b16 %v1319, %v1318
    %v1378 = vpack.c.b16 %v1321, %v1320
    %v1379 = vpack.c.b16 %v1323, %v1322
    %v1380 = vpack.c.b16 %v1325, %v1324
    %v1381 = vpack.c.b16 %v1327, %v1326
    %v1382 = vpack.c.b16 %v1329, %v1328
    %v1383 = vpack.c.b16 %v1331, %v1330
    %v1384 = vpack.c.b16 %v1333, %v1332
    %v1385 = vpack.c.b16 %v1335, %v1334
    %v1386 = vpack.c.b16 %v1337, %v1336
    %v1387 = vpack.c.b16 %v1339, %v1338
    %v1388 = vpack.c.b16 %v1341, %v1340
    %v1389 = vpack.c.b16 %v1343, %v1342
    %v1390 = vpack.c.b16 %v1345, %v1344
    %v1391 = vpack.c.b16 %v1347, %v1346
    %v1392 = vpack.c.b16 %v1349, %v1348
    %v1393 = vpack.c.b16 %v1351, %v1350
    %v1394 = vpack.c.b16 %v1353, %v1352
    %v1395 = vpack.c.b16 %v1355, %v1354
    %v1396 = vpack.c.b16 %v1357, %v1356
    %v1397 = vpack.c.b16 %v1359, %v1358
    %v1398 = vpack.c.b16 %v1361, %v1360
    %v1399 = vpack.c.b16 %v1363, %v1362
    %v1400 = vpack.c.b16 %v1365, %v1364
    %v1401 = vpack.c.b16 %v1367, %v1366
    %v1402 = vpack.c.b16 %v1369, %v1368
    %v1403 = vpack.c.b16 %v1371, %v1370
    %1436 = vmatprep.subr.bf16.mxu0 0
    %1437 = vmatpush1.bf16.msra.mxu0 %v1379
    %1438 = vmatprep.subr.bf16.mxu0 0
    %1439 = vmatpush1.bf16.msra.mxu0 %v1378
    %1440 = vmatprep.subr.bf16.mxu0 0
    %1441 = vmatpush1.bf16.msra.mxu0 %v1377
    %1442 = vmatprep.subr.bf16.mxu0 0
    %1443 = vmatpush1.bf16.msra.mxu0 %v1376
    %1444 = vmatprep.subr.bf16.mxu0 0
    %1445 = vmatpush1.bf16.msra.mxu0 %v1375
    %1446 = vmatprep.subr.bf16.mxu0 0
    %1447 = vmatpush1.bf16.msra.mxu0 %v1374
    %1448 = vmatprep.subr.bf16.mxu0 0
    %1449 = vmatpush1.bf16.msra.mxu0 %v1373
    %1450 = vmatprep.subr.bf16.mxu0 0
    %1451 = vmatpush1.bf16.msra.mxu0 %v1372
    %1452 = vmatprep.subr.bf16.mxu0 0
    %1453 = vmatpush2.bf16.msra.mxu0 %v1387
    %1454 = vmatprep.subr.bf16.mxu0 0
    %1455 = vmatpush2.bf16.msra.mxu0 %v1386
    %1456 = vmatprep.subr.bf16.mxu0 0
    %1457 = vmatpush2.bf16.msra.mxu0 %v1385
    %1458 = vmatprep.subr.bf16.mxu0 0
    %1459 = vmatpush2.bf16.msra.mxu0 %v1384
    %1460 = vmatprep.subr.bf16.mxu0 0
    %1461 = vmatpush2.bf16.msra.mxu0 %v1383
    %1462 = vmatprep.subr.bf16.mxu0 0
    %1463 = vmatpush2.bf16.msra.mxu0 %v1382
    %1464 = vmatprep.subr.bf16.mxu0 0
    %1465 = vmatpush2.bf16.msra.mxu0 %v1381
    %1466 = vmatprep.subr.bf16.mxu0 0
    %1467 = vmatpush2.bf16.msra.mxu0 %v1380
    %1468 = vmatprep.mubr.bf16.mxu0 %v989
    %1469 = vmatmul.mubr.bf16.gmra.mxu0 %v988
    %v1470 = vpop.f32.mrf.mxu0
    %v1471 = vadd.f32 %v287, %v1470
    %v1472 = vpop.f32.mrf.mxu0
    %v1473 = vpop.f32.mrf.mxu0
    %v1474 = vadd.f32 %v292, %v1473
    %v1475 = vpop.f32.mrf.mxu0
    %1476 = vmatprep.mubr.bf16.mxu0 %v993
    %1477 = vmatmul.mubr.bf16.gmra.mxu0 %v992
    %v1478 = vpop.f32.mrf.mxu0
    %v1479 = vadd.f32 %v297, %v1478
    %v1480 = vpop.f32.mrf.mxu0
    %v1481 = vpop.f32.mrf.mxu0
    %v1482 = vadd.f32 %v302, %v1481
    %v1483 = vpop.f32.mrf.mxu0
    %1484 = vmatprep.mubr.bf16.mxu0 %v997
    %1485 = vmatmul.mubr.bf16.gmra.mxu0 %v996
    %v1486 = vpop.f32.mrf.mxu0
    %v1487 = vadd.f32 %v307, %v1486
    %v1488 = vpop.f32.mrf.mxu0
    %v1489 = vpop.f32.mrf.mxu0
    %v1490 = vadd.f32 %v312, %v1489
    %v1491 = vpop.f32.mrf.mxu0
    %1492 = vmatprep.mubr.bf16.mxu0 %v1001
    %1493 = vmatmul.mubr.bf16.gmra.mxu0 %v1000
    %v1494 = vpop.f32.mrf.mxu0
    %v1495 = vadd.f32 %v317, %v1494
    %v1496 = vpop.f32.mrf.mxu0
    %v1497 = vpop.f32.mrf.mxu0
    %v1498 = vadd.f32 %v322, %v1497
    %v1499 = vpop.f32.mrf.mxu0
    %1500 = vmatprep.mubr.bf16.mxu0 %v1005
    %1501 = vmatmul.mubr.bf16.gmra.mxu0 %v1004
    %v1502 = vpop.f32.mrf.mxu0
    %v1503 = vadd.f32 %v327, %v1502
    %v1504 = vpop.f32.mrf.mxu0
    %v1505 = vpop.f32.mrf.mxu0
    %v1506 = vadd.f32 %v332, %v1505
    %v1507 = vpop.f32.mrf.mxu0
    %1508 = vmatprep.mubr.bf16.mxu0 %v1009
    %1509 = vmatmul.mubr.bf16.gmra.mxu0 %v1008
    %v1510 = vpop.f32.mrf.mxu0
    %v1511 = vadd.f32 %v337, %v1510
    %v1512 = vpop.f32.mrf.mxu0
    %v1513 = vpop.f32.mrf.mxu0
    %v1514 = vadd.f32 %v342, %v1513
    %v1515 = vpop.f32.mrf.mxu0
    %1516 = vmatprep.mubr.bf16.mxu0 %v1013
    %1517 = vmatmul.mubr.bf16.gmra.mxu0 %v1012
    %v1518 = vpop.f32.mrf.mxu0
    %v1519 = vadd.f32 %v347, %v1518
    %v1520 = vpop.f32.mrf.mxu0
    %v1521 = vpop.f32.mrf.mxu0
    %v1522 = vadd.f32 %v352, %v1521
    %v1523 = vpop.f32.mrf.mxu0
    %1524 = vmatprep.mubr.bf16.mxu0 %v1017
    %1525 = vmatmul.mubr.bf16.gmra.mxu0 %v1016
    %v1526 = vpop.f32.mrf.mxu0
    %v1527 = vadd.f32 %v357, %v1526
    %v1528 = vpop.f32.mrf.mxu0
    %v1529 = vpop.f32.mrf.mxu0
    %v1530 = vadd.f32 %v362, %v1529
    %v1531 = vpop.f32.mrf.mxu0
    %1532 = vmatprep.mubr.bf16.mxu0 %v1021
    %1533 = vmatmul.mubr.bf16.gmra.mxu0 %v1020
    %v1534 = vpop.f32.mrf.mxu0
    %v1535 = vadd.f32 %v367, %v1534
    %v1536 = vpop.f32.mrf.mxu0
    %v1537 = vpop.f32.mrf.mxu0
    %v1538 = vadd.f32 %v372, %v1537
    %v1539 = vpop.f32.mrf.mxu0
    %1540 = vmatprep.mubr.bf16.mxu0 %v1025
    %1541 = vmatmul.mubr.bf16.gmra.mxu0 %v1024
    %v1542 = vpop.f32.mrf.mxu0
    %v1543 = vadd.f32 %v377, %v1542
    %v1544 = vpop.f32.mrf.mxu0
    %v1545 = vpop.f32.mrf.mxu0
    %v1546 = vadd.f32 %v382, %v1545
    %v1547 = vpop.f32.mrf.mxu0
    %1548 = vmatprep.mubr.bf16.mxu0 %v1029
    %1549 = vmatmul.mubr.bf16.gmra.mxu0 %v1028
    %v1550 = vpop.f32.mrf.mxu0
    %v1551 = vadd.f32 %v387, %v1550
    %v1552 = vpop.f32.mrf.mxu0
    %v1553 = vpop.f32.mrf.mxu0
    %v1554 = vadd.f32 %v392, %v1553
    %v1555 = vpop.f32.mrf.mxu0
    %1556 = vmatprep.mubr.bf16.mxu0 %v1033
    %1557 = vmatmul.mubr.bf16.gmra.mxu0 %v1032
    %v1558 = vpop.f32.mrf.mxu0
    %v1559 = vadd.f32 %v397, %v1558
    %v1560 = vpop.f32.mrf.mxu0
    %v1561 = vpop.f32.mrf.mxu0
    %v1562 = vadd.f32 %v402, %v1561
    %v1563 = vpop.f32.mrf.mxu0
    %1564 = vmatprep.mubr.bf16.mxu0 %v1037
    %1565 = vmatmul.mubr.bf16.gmra.mxu0 %v1036
    %v1566 = vpop.f32.mrf.mxu0
    %v1567 = vadd.f32 %v407, %v1566
    %v1568 = vpop.f32.mrf.mxu0
    %v1569 = vpop.f32.mrf.mxu0
    %v1570 = vadd.f32 %v412, %v1569
    %v1571 = vpop.f32.mrf.mxu0
    %1572 = vmatprep.mubr.bf16.mxu0 %v1041
    %1573 = vmatmul.mubr.bf16.gmra.mxu0 %v1040
    %v1574 = vpop.f32.mrf.mxu0
    %v1575 = vadd.f32 %v417, %v1574
    %v1576 = vpop.f32.mrf.mxu0
    %v1577 = vpop.f32.mrf.mxu0
    %v1578 = vadd.f32 %v422, %v1577
    %v1579 = vpop.f32.mrf.mxu0
    %1580 = vmatprep.mubr.bf16.mxu0 %v1045
    %1581 = vmatmul.mubr.bf16.gmra.mxu0 %v1044
    %v1582 = vpop.f32.mrf.mxu0
    %v1583 = vadd.f32 %v427, %v1582
    %v1584 = vpop.f32.mrf.mxu0
    %v1585 = vpop.f32.mrf.mxu0
    %v1586 = vadd.f32 %v432, %v1585
    %v1587 = vpop.f32.mrf.mxu0
    %1588 = vmatprep.mubr.bf16.mxu0 %v1049
    %1589 = vmatmul.mubr.bf16.gmra.mxu0 %v1048
    %v1590 = vpop.f32.mrf.mxu0
    %v1591 = vadd.f32 %v437, %v1590
    %v1592 = vpop.f32.mrf.mxu0
    %v1593 = vpop.f32.mrf.mxu0
    %v1594 = vadd.f32 %v442, %v1593
    %v1595 = vpop.f32.mrf.mxu0
    %1596 = vmatprep.mubr.bf16.mxu0 %v1053
    %1597 = vmatmul.mubr.bf16.gmra.mxu0 %v1052
    %v1598 = vpop.f32.mrf.mxu0
    %v1599 = vadd.f32 %v447, %v1598
    %v1600 = vpop.f32.mrf.mxu0
    %v1601 = vpop.f32.mrf.mxu0
    %v1602 = vadd.f32 %v452, %v1601
    %v1603 = vpop.f32.mrf.mxu0
    %1604 = vmatprep.mubr.bf16.mxu0 %v1057
    %1605 = vmatmul.mubr.bf16.gmra.mxu0 %v1056
    %v1606 = vpop.f32.mrf.mxu0
    %v1607 = vadd.f32 %v457, %v1606
    %v1608 = vpop.f32.mrf.mxu0
    %v1609 = vpop.f32.mrf.mxu0
    %v1610 = vadd.f32 %v462, %v1609
    %v1611 = vpop.f32.mrf.mxu0
    %1612 = vmatprep.mubr.bf16.mxu0 %v1061
    %1613 = vmatmul.mubr.bf16.gmra.mxu0 %v1060
    %v1614 = vpop.f32.mrf.mxu0
    %v1615 = vadd.f32 %v467, %v1614
    %v1616 = vpop.f32.mrf.mxu0
    %v1617 = vpop.f32.mrf.mxu0
    %v1618 = vadd.f32 %v472, %v1617
    %v1619 = vpop.f32.mrf.mxu0
    %1620 = vmatprep.mubr.bf16.mxu0 %v1065
    %1621 = vmatmul.mubr.bf16.gmra.mxu0 %v1064
    %v1622 = vpop.f32.mrf.mxu0
    %v1623 = vadd.f32 %v477, %v1622
    %v1624 = vpop.f32.mrf.mxu0
    %v1625 = vpop.f32.mrf.mxu0
    %v1626 = vadd.f32 %v482, %v1625
    %v1627 = vpop.f32.mrf.mxu0
    %1628 = vmatprep.mubr.bf16.mxu0 %v1069
    %1629 = vmatmul.mubr.bf16.gmra.mxu0 %v1068
    %v1630 = vpop.f32.mrf.mxu0
    %v1631 = vadd.f32 %v487, %v1630
    %v1632 = vpop.f32.mrf.mxu0
    %v1633 = vpop.f32.mrf.mxu0
    %v1634 = vadd.f32 %v492, %v1633
    %v1635 = vpop.f32.mrf.mxu0
    %1636 = vmatprep.mubr.bf16.mxu0 %v1073
    %1637 = vmatmul.mubr.bf16.gmra.mxu0 %v1072
    %v1638 = vpop.f32.mrf.mxu0
    %v1639 = vadd.f32 %v497, %v1638
    %v1640 = vpop.f32.mrf.mxu0
    %v1641 = vpop.f32.mrf.mxu0
    %v1642 = vadd.f32 %v502, %v1641
    %v1643 = vpop.f32.mrf.mxu0
    %1644 = vmatprep.mubr.bf16.mxu0 %v1077
    %1645 = vmatmul.mubr.bf16.gmra.mxu0 %v1076
    %v1646 = vpop.f32.mrf.mxu0
    %v1647 = vadd.f32 %v507, %v1646
    %v1648 = vpop.f32.mrf.mxu0
    %v1649 = vpop.f32.mrf.mxu0
    %v1650 = vadd.f32 %v512, %v1649
    %v1651 = vpop.f32.mrf.mxu0
    %1652 = vmatprep.mubr.bf16.mxu0 %v1081
    %1653 = vmatmul.mubr.bf16.gmra.mxu0 %v1080
    %v1654 = vpop.f32.mrf.mxu0
    %v1655 = vadd.f32 %v517, %v1654
    %v1656 = vpop.f32.mrf.mxu0
    %v1657 = vpop.f32.mrf.mxu0
    %v1658 = vadd.f32 %v522, %v1657
    %v1659 = vpop.f32.mrf.mxu0
    %1660 = vmatprep.mubr.bf16.mxu0 %v1085
    %1661 = vmatmul.mubr.bf16.gmra.mxu0 %v1084
    %v1662 = vpop.f32.mrf.mxu0
    %v1663 = vadd.f32 %v527, %v1662
    %v1664 = vpop.f32.mrf.mxu0
    %v1665 = vpop.f32.mrf.mxu0
    %v1666 = vadd.f32 %v532, %v1665
    %v1667 = vpop.f32.mrf.mxu0
    %1668 = vmatprep.mubr.bf16.mxu0 %v1089
    %1669 = vmatmul.mubr.bf16.gmra.mxu0 %v1088
    %v1670 = vpop.f32.mrf.mxu0
    %v1671 = vadd.f32 %v537, %v1670
    %v1672 = vpop.f32.mrf.mxu0
    %v1673 = vpop.f32.mrf.mxu0
    %v1674 = vadd.f32 %v542, %v1673
    %v1675 = vpop.f32.mrf.mxu0
    %1676 = vmatprep.mubr.bf16.mxu0 %v1093
    %1677 = vmatmul.mubr.bf16.gmra.mxu0 %v1092
    %v1678 = vpop.f32.mrf.mxu0
    %v1679 = vadd.f32 %v547, %v1678
    %v1680 = vpop.f32.mrf.mxu0
    %v1681 = vpop.f32.mrf.mxu0
    %v1682 = vadd.f32 %v552, %v1681
    %v1683 = vpop.f32.mrf.mxu0
    %1684 = vmatprep.mubr.bf16.mxu0 %v1097
    %1685 = vmatmul.mubr.bf16.gmra.mxu0 %v1096
    %v1686 = vpop.f32.mrf.mxu0
    %v1687 = vadd.f32 %v557, %v1686
    %v1688 = vpop.f32.mrf.mxu0
    %v1689 = vpop.f32.mrf.mxu0
    %v1690 = vadd.f32 %v562, %v1689
    %v1691 = vpop.f32.mrf.mxu0
    %1692 = vmatprep.mubr.bf16.mxu0 %v1101
    %1693 = vmatmul.mubr.bf16.gmra.mxu0 %v1100
    %v1694 = vpop.f32.mrf.mxu0
    %v1695 = vadd.f32 %v567, %v1694
    %v1696 = vpop.f32.mrf.mxu0
    %v1697 = vpop.f32.mrf.mxu0
    %v1698 = vadd.f32 %v572, %v1697
    %v1699 = vpop.f32.mrf.mxu0
    %1700 = vmatprep.mubr.bf16.mxu0 %v1105
    %1701 = vmatmul.mubr.bf16.gmra.mxu0 %v1104
    %v1702 = vpop.f32.mrf.mxu0
    %v1703 = vadd.f32 %v577, %v1702
    %v1704 = vpop.f32.mrf.mxu0
    %v1705 = vpop.f32.mrf.mxu0
    %v1706 = vadd.f32 %v582, %v1705
    %v1707 = vpop.f32.mrf.mxu0
    %1708 = vmatprep.mubr.bf16.mxu0 %v1109
    %1709 = vmatmul.mubr.bf16.gmra.mxu0 %v1108
    %v1710 = vpop.f32.mrf.mxu0
    %v1711 = vadd.f32 %v587, %v1710
    %v1712 = vpop.f32.mrf.mxu0
    %v1713 = vpop.f32.mrf.mxu0
    %v1714 = vadd.f32 %v592, %v1713
    %v1715 = vpop.f32.mrf.mxu0
    %1716 = vmatprep.mubr.bf16.mxu0 %v1113
    %1717 = vmatmul.mubr.bf16.gmra.mxu0 %v1112
    %v1718 = vpop.f32.mrf.mxu0
    %v1719 = vadd.f32 %v597, %v1718
    %v1720 = vpop.f32.mrf.mxu0
    %v1721 = vpop.f32.mrf.mxu0
    %v1722 = vadd.f32 %v602, %v1721
    %v1723 = vpop.f32.mrf.mxu0
    %1724 = vdwg.mxu0
    %1725 = vmatprep.subr.bf16.mxu0 0
    %1726 = vmatpush1.bf16.msra.mxu0 %v1395
    %1727 = vmatprep.subr.bf16.mxu0 0
    %1728 = vmatpush1.bf16.msra.mxu0 %v1394
    %1729 = vmatprep.subr.bf16.mxu0 0
    %1730 = vmatpush1.bf16.msra.mxu0 %v1393
    %1731 = vmatprep.subr.bf16.mxu0 0
    %1732 = vmatpush1.bf16.msra.mxu0 %v1392
    %1733 = vmatprep.subr.bf16.mxu0 0
    %1734 = vmatpush1.bf16.msra.mxu0 %v1391
    %1735 = vmatprep.subr.bf16.mxu0 0
    %1736 = vmatpush1.bf16.msra.mxu0 %v1390
    %1737 = vmatprep.subr.bf16.mxu0 0
    %1738 = vmatpush1.bf16.msra.mxu0 %v1389
    %1739 = vmatprep.subr.bf16.mxu0 0
    %1740 = vmatpush1.bf16.msra.mxu0 %v1388
    %1741 = vmatprep.subr.bf16.mxu0 0
    %1742 = vmatpush2.bf16.msra.mxu0 %v1403
    %1743 = vmatprep.subr.bf16.mxu0 0
    %1744 = vmatpush2.bf16.msra.mxu0 %v1402
    %1745 = vmatprep.subr.bf16.mxu0 0
    %1746 = vmatpush2.bf16.msra.mxu0 %v1401
    %1747 = vmatprep.subr.bf16.mxu0 0
    %1748 = vmatpush2.bf16.msra.mxu0 %v1400
    %1749 = vmatprep.subr.bf16.mxu0 0
    %1750 = vmatpush2.bf16.msra.mxu0 %v1399
    %1751 = vmatprep.subr.bf16.mxu0 0
    %1752 = vmatpush2.bf16.msra.mxu0 %v1398
    %1753 = vmatprep.subr.bf16.mxu0 0
    %1754 = vmatpush2.bf16.msra.mxu0 %v1397
    %1755 = vmatprep.subr.bf16.mxu0 0
    %1756 = vmatpush2.bf16.msra.mxu0 %v1396
    %1757 = vmatprep.mubr.bf16.mxu0 %v991
    %1758 = vmatmul.mubr.bf16.gmra.mxu0 %v990
    %v1759 = vpop.f32.mrf.mxu0
    %v1760 = vadd.f32 %v1471, %v1759
    %v1761 = vpop.f32.mrf.mxu0
    %v1762 = vpop.f32.mrf.mxu0
    %v1763 = vadd.f32 %v1474, %v1762
    %v1764 = vpop.f32.mrf.mxu0
    %1765 = vmatprep.mubr.bf16.mxu0 %v995
    %1766 = vmatmul.mubr.bf16.gmra.mxu0 %v994
    %v1767 = vpop.f32.mrf.mxu0
    %v1768 = vadd.f32 %v1479, %v1767
    %v1769 = vpop.f32.mrf.mxu0
    %v1770 = vpop.f32.mrf.mxu0
    %v1771 = vadd.f32 %v1482, %v1770
    %v1772 = vpop.f32.mrf.mxu0
    %1773 = vmatprep.mubr.bf16.mxu0 %v999
    %1774 = vmatmul.mubr.bf16.gmra.mxu0 %v998
    %v1775 = vpop.f32.mrf.mxu0
    %v1776 = vadd.f32 %v1487, %v1775
    %v1777 = vpop.f32.mrf.mxu0
    %v1778 = vpop.f32.mrf.mxu0
    %v1779 = vadd.f32 %v1490, %v1778
    %v1780 = vpop.f32.mrf.mxu0
    %1781 = vmatprep.mubr.bf16.mxu0 %v1003
    %1782 = vmatmul.mubr.bf16.gmra.mxu0 %v1002
    %v1783 = vpop.f32.mrf.mxu0
    %v1784 = vadd.f32 %v1495, %v1783
    %v1785 = vpop.f32.mrf.mxu0
    %v1786 = vpop.f32.mrf.mxu0
    %v1787 = vadd.f32 %v1498, %v1786
    %v1788 = vpop.f32.mrf.mxu0
    %1789 = vmatprep.mubr.bf16.mxu0 %v1007
    %1790 = vmatmul.mubr.bf16.gmra.mxu0 %v1006
    %v1791 = vpop.f32.mrf.mxu0
    %v1792 = vadd.f32 %v1503, %v1791
    %v1793 = vpop.f32.mrf.mxu0
    %v1794 = vpop.f32.mrf.mxu0
    %v1795 = vadd.f32 %v1506, %v1794
    %v1796 = vpop.f32.mrf.mxu0
    %1797 = vmatprep.mubr.bf16.mxu0 %v1011
    %1798 = vmatmul.mubr.bf16.gmra.mxu0 %v1010
    %v1799 = vpop.f32.mrf.mxu0
    %v1800 = vadd.f32 %v1511, %v1799
    %v1801 = vpop.f32.mrf.mxu0
    %v1802 = vpop.f32.mrf.mxu0
    %v1803 = vadd.f32 %v1514, %v1802
    %v1804 = vpop.f32.mrf.mxu0
    %1805 = vmatprep.mubr.bf16.mxu0 %v1015
    %1806 = vmatmul.mubr.bf16.gmra.mxu0 %v1014
    %v1807 = vpop.f32.mrf.mxu0
    %v1808 = vadd.f32 %v1519, %v1807
    %v1809 = vpop.f32.mrf.mxu0
    %v1810 = vpop.f32.mrf.mxu0
    %v1811 = vadd.f32 %v1522, %v1810
    %v1812 = vpop.f32.mrf.mxu0
    %1813 = vmatprep.mubr.bf16.mxu0 %v1019
    %1814 = vmatmul.mubr.bf16.gmra.mxu0 %v1018
    %v1815 = vpop.f32.mrf.mxu0
    %v1816 = vadd.f32 %v1527, %v1815
    %v1817 = vpop.f32.mrf.mxu0
    %v1818 = vpop.f32.mrf.mxu0
    %v1819 = vadd.f32 %v1530, %v1818
    %v1820 = vpop.f32.mrf.mxu0
    %1821 = vmatprep.mubr.bf16.mxu0 %v1023
    %1822 = vmatmul.mubr.bf16.gmra.mxu0 %v1022
    %v1823 = vpop.f32.mrf.mxu0
    %v1824 = vadd.f32 %v1535, %v1823
    %v1825 = vpop.f32.mrf.mxu0
    %v1826 = vpop.f32.mrf.mxu0
    %v1827 = vadd.f32 %v1538, %v1826
    %v1828 = vpop.f32.mrf.mxu0
    %1829 = vmatprep.mubr.bf16.mxu0 %v1027
    %1830 = vmatmul.mubr.bf16.gmra.mxu0 %v1026
    %v1831 = vpop.f32.mrf.mxu0
    %v1832 = vadd.f32 %v1543, %v1831
    %v1833 = vpop.f32.mrf.mxu0
    %v1834 = vpop.f32.mrf.mxu0
    %v1835 = vadd.f32 %v1546, %v1834
    %v1836 = vpop.f32.mrf.mxu0
    %1837 = vmatprep.mubr.bf16.mxu0 %v1031
    %1838 = vmatmul.mubr.bf16.gmra.mxu0 %v1030
    %v1839 = vpop.f32.mrf.mxu0
    %v1840 = vadd.f32 %v1551, %v1839
    %v1841 = vpop.f32.mrf.mxu0
    %v1842 = vpop.f32.mrf.mxu0
    %v1843 = vadd.f32 %v1554, %v1842
    %v1844 = vpop.f32.mrf.mxu0
    %1845 = vmatprep.mubr.bf16.mxu0 %v1035
    %1846 = vmatmul.mubr.bf16.gmra.mxu0 %v1034
    %v1847 = vpop.f32.mrf.mxu0
    %v1848 = vadd.f32 %v1559, %v1847
    %v1849 = vpop.f32.mrf.mxu0
    %v1850 = vpop.f32.mrf.mxu0
    %v1851 = vadd.f32 %v1562, %v1850
    %v1852 = vpop.f32.mrf.mxu0
    %1853 = vmatprep.mubr.bf16.mxu0 %v1039
    %1854 = vmatmul.mubr.bf16.gmra.mxu0 %v1038
    %v1855 = vpop.f32.mrf.mxu0
    %v1856 = vadd.f32 %v1567, %v1855
    %v1857 = vpop.f32.mrf.mxu0
    %v1858 = vpop.f32.mrf.mxu0
    %v1859 = vadd.f32 %v1570, %v1858
    %v1860 = vpop.f32.mrf.mxu0
    %1861 = vmatprep.mubr.bf16.mxu0 %v1043
    %1862 = vmatmul.mubr.bf16.gmra.mxu0 %v1042
    %v1863 = vpop.f32.mrf.mxu0
    %v1864 = vadd.f32 %v1575, %v1863
    %v1865 = vpop.f32.mrf.mxu0
    %v1866 = vpop.f32.mrf.mxu0
    %v1867 = vadd.f32 %v1578, %v1866
    %v1868 = vpop.f32.mrf.mxu0
    %1869 = vmatprep.mubr.bf16.mxu0 %v1047
    %1870 = vmatmul.mubr.bf16.gmra.mxu0 %v1046
    %v1871 = vpop.f32.mrf.mxu0
    %v1872 = vadd.f32 %v1583, %v1871
    %v1873 = vpop.f32.mrf.mxu0
    %v1874 = vpop.f32.mrf.mxu0
    %v1875 = vadd.f32 %v1586, %v1874
    %v1876 = vpop.f32.mrf.mxu0
    %1877 = vmatprep.mubr.bf16.mxu0 %v1051
    %1878 = vmatmul.mubr.bf16.gmra.mxu0 %v1050
    %v1879 = vpop.f32.mrf.mxu0
    %v1880 = vadd.f32 %v1591, %v1879
    %v1881 = vpop.f32.mrf.mxu0
    %v1882 = vpop.f32.mrf.mxu0
    %v1883 = vadd.f32 %v1594, %v1882
    %v1884 = vpop.f32.mrf.mxu0
    %1885 = vmatprep.mubr.bf16.mxu0 %v1055
    %1886 = vmatmul.mubr.bf16.gmra.mxu0 %v1054
    %v1887 = vpop.f32.mrf.mxu0
    %v1888 = vadd.f32 %v1599, %v1887
    %v1889 = vpop.f32.mrf.mxu0
    %v1890 = vpop.f32.mrf.mxu0
    %v1891 = vadd.f32 %v1602, %v1890
    %v1892 = vpop.f32.mrf.mxu0
    %1893 = vmatprep.mubr.bf16.mxu0 %v1059
    %1894 = vmatmul.mubr.bf16.gmra.mxu0 %v1058
    %v1895 = vpop.f32.mrf.mxu0
    %v1896 = vadd.f32 %v1607, %v1895
    %v1897 = vpop.f32.mrf.mxu0
    %v1898 = vpop.f32.mrf.mxu0
    %v1899 = vadd.f32 %v1610, %v1898
    %v1900 = vpop.f32.mrf.mxu0
    %1901 = vmatprep.mubr.bf16.mxu0 %v1063
    %1902 = vmatmul.mubr.bf16.gmra.mxu0 %v1062
    %v1903 = vpop.f32.mrf.mxu0
    %v1904 = vadd.f32 %v1615, %v1903
    %v1905 = vpop.f32.mrf.mxu0
    %v1906 = vpop.f32.mrf.mxu0
    %v1907 = vadd.f32 %v1618, %v1906
    %v1908 = vpop.f32.mrf.mxu0
    %1909 = vmatprep.mubr.bf16.mxu0 %v1067
    %1910 = vmatmul.mubr.bf16.gmra.mxu0 %v1066
    %v1911 = vpop.f32.mrf.mxu0
    %v1912 = vadd.f32 %v1623, %v1911
    %v1913 = vpop.f32.mrf.mxu0
    %v1914 = vpop.f32.mrf.mxu0
    %v1915 = vadd.f32 %v1626, %v1914
    %v1916 = vpop.f32.mrf.mxu0
    %1917 = vmatprep.mubr.bf16.mxu0 %v1071
    %1918 = vmatmul.mubr.bf16.gmra.mxu0 %v1070
    %v1919 = vpop.f32.mrf.mxu0
    %v1920 = vadd.f32 %v1631, %v1919
    %v1921 = vpop.f32.mrf.mxu0
    %v1922 = vpop.f32.mrf.mxu0
    %v1923 = vadd.f32 %v1634, %v1922
    %v1924 = vpop.f32.mrf.mxu0
    %1925 = vmatprep.mubr.bf16.mxu0 %v1075
    %1926 = vmatmul.mubr.bf16.gmra.mxu0 %v1074
    %v1927 = vpop.f32.mrf.mxu0
    %v1928 = vadd.f32 %v1639, %v1927
    %v1929 = vpop.f32.mrf.mxu0
    %v1930 = vpop.f32.mrf.mxu0
    %v1931 = vadd.f32 %v1642, %v1930
    %v1932 = vpop.f32.mrf.mxu0
    %1933 = vmatprep.mubr.bf16.mxu0 %v1079
    %1934 = vmatmul.mubr.bf16.gmra.mxu0 %v1078
    %v1935 = vpop.f32.mrf.mxu0
    %v1936 = vadd.f32 %v1647, %v1935
    %v1937 = vpop.f32.mrf.mxu0
    %v1938 = vpop.f32.mrf.mxu0
    %v1939 = vadd.f32 %v1650, %v1938
    %v1940 = vpop.f32.mrf.mxu0
    %1941 = vmatprep.mubr.bf16.mxu0 %v1083
    %1942 = vmatmul.mubr.bf16.gmra.mxu0 %v1082
    %v1943 = vpop.f32.mrf.mxu0
    %v1944 = vadd.f32 %v1655, %v1943
    %v1945 = vpop.f32.mrf.mxu0
    %v1946 = vpop.f32.mrf.mxu0
    %v1947 = vadd.f32 %v1658, %v1946
    %v1948 = vpop.f32.mrf.mxu0
    %1949 = vmatprep.mubr.bf16.mxu0 %v1087
    %1950 = vmatmul.mubr.bf16.gmra.mxu0 %v1086
    %v1951 = vpop.f32.mrf.mxu0
    %v1952 = vadd.f32 %v1663, %v1951
    %v1953 = vpop.f32.mrf.mxu0
    %v1954 = vpop.f32.mrf.mxu0
    %v1955 = vadd.f32 %v1666, %v1954
    %v1956 = vpop.f32.mrf.mxu0
    %1957 = vmatprep.mubr.bf16.mxu0 %v1091
    %1958 = vmatmul.mubr.bf16.gmra.mxu0 %v1090
    %v1959 = vpop.f32.mrf.mxu0
    %v1960 = vadd.f32 %v1671, %v1959
    %v1961 = vpop.f32.mrf.mxu0
    %v1962 = vpop.f32.mrf.mxu0
    %v1963 = vadd.f32 %v1674, %v1962
    %v1964 = vpop.f32.mrf.mxu0
    %1965 = vmatprep.mubr.bf16.mxu0 %v1095
    %1966 = vmatmul.mubr.bf16.gmra.mxu0 %v1094
    %v1967 = vpop.f32.mrf.mxu0
    %v1968 = vadd.f32 %v1679, %v1967
    %v1969 = vpop.f32.mrf.mxu0
    %v1970 = vpop.f32.mrf.mxu0
    %v1971 = vadd.f32 %v1682, %v1970
    %v1972 = vpop.f32.mrf.mxu0
    %1973 = vmatprep.mubr.bf16.mxu0 %v1099
    %1974 = vmatmul.mubr.bf16.gmra.mxu0 %v1098
    %v1975 = vpop.f32.mrf.mxu0
    %v1976 = vadd.f32 %v1687, %v1975
    %v1977 = vpop.f32.mrf.mxu0
    %v1978 = vpop.f32.mrf.mxu0
    %v1979 = vadd.f32 %v1690, %v1978
    %v1980 = vpop.f32.mrf.mxu0
    %1981 = vmatprep.mubr.bf16.mxu0 %v1103
    %1982 = vmatmul.mubr.bf16.gmra.mxu0 %v1102
    %v1983 = vpop.f32.mrf.mxu0
    %v1984 = vadd.f32 %v1695, %v1983
    %v1985 = vpop.f32.mrf.mxu0
    %v1986 = vpop.f32.mrf.mxu0
    %v1987 = vadd.f32 %v1698, %v1986
    %v1988 = vpop.f32.mrf.mxu0
    %1989 = vmatprep.mubr.bf16.mxu0 %v1107
    %1990 = vmatmul.mubr.bf16.gmra.mxu0 %v1106
    %v1991 = vpop.f32.mrf.mxu0
    %v1992 = vadd.f32 %v1703, %v1991
    %v1993 = vpop.f32.mrf.mxu0
    %v1994 = vpop.f32.mrf.mxu0
    %v1995 = vadd.f32 %v1706, %v1994
    %v1996 = vpop.f32.mrf.mxu0
    %1997 = vmatprep.mubr.bf16.mxu0 %v1111
    %1998 = vmatmul.mubr.bf16.gmra.mxu0 %v1110
    %v1999 = vpop.f32.mrf.mxu0
    %v2000 = vadd.f32 %v1711, %v1999
    %v2001 = vpop.f32.mrf.mxu0
    %v2002 = vpop.f32.mrf.mxu0
    %v2003 = vadd.f32 %v1714, %v2002
    %v2004 = vpop.f32.mrf.mxu0
    %2005 = vmatprep.mubr.bf16.mxu0 %v1115
    %2006 = vmatmul.mubr.bf16.gmra.mxu0 %v1114
    %v2007 = vpop.f32.mrf.mxu0
    %v2008 = vadd.f32 %v1719, %v2007
    %v2009 = vpop.f32.mrf.mxu0
    %v2010 = vpop.f32.mrf.mxu0
    %v2011 = vadd.f32 %v1722, %v2010
    %v2012 = vpop.f32.mrf.mxu0
    %2013 = vdwg.mxu0
    %v2014 = vld [vmem:[%s3] sm:$0xff]
    %v2015 = vld [vmem:[%s3 + $0x8] sm:$0xff]
    %v2016 = vld [vmem:[%s3 + $0x10] sm:$0xff]
    %v2017 = vld [vmem:[%s3 + $0x18] sm:$0xff]
    %v2018 = vld [vmem:[%s3 + $0x20] sm:$0xff]
    %v2019 = vld [vmem:[%s3 + $0x28] sm:$0xff]
    %v2020 = vld [vmem:[%s3 + $0x30] sm:$0xff]
    %v2021 = vld [vmem:[%s3 + $0x38] sm:$0xff]
    %v2022 = vld [vmem:[%s3 + $0x40] sm:$0xff]
    %v2023 = vld [vmem:[%s3 + $0x48] sm:$0xff]
    %v2024 = vld [vmem:[%s3 + $0x50] sm:$0xff]
    %v2025 = vld [vmem:[%s3 + $0x58] sm:$0xff]
    %v2026 = vld [vmem:[%s3 + $0x60] sm:$0xff]
    %v2027 = vld [vmem:[%s3 + $0x68] sm:$0xff]
    %v2028 = vld [vmem:[%s3 + $0x70] sm:$0xff]
    %v2029 = vld [vmem:[%s3 + $0x78] sm:$0xff]
    %v2030 = vpack.c.bf16 %v1763, %v1760
    %v2031 = vpack.c.bf16 %v1771, %v1768
    %v2032 = vpack.c.bf16 %v1779, %v1776
    %v2033 = vpack.c.bf16 %v1787, %v1784
    %v2034 = vpack.c.bf16 %v1795, %v1792
    %v2035 = vpack.c.bf16 %v1803, %v1800
    %v2036 = vpack.c.bf16 %v1811, %v1808
    %v2037 = vpack.c.bf16 %v1819, %v1816
    %v2038 = vpack.c.bf16 %v1827, %v1824
    %v2039 = vpack.c.bf16 %v1835, %v1832
    %v2040 = vpack.c.bf16 %v1843, %v1840
    %v2041 = vpack.c.bf16 %v1851, %v1848
    %v2042 = vpack.c.bf16 %v1859, %v1856
    %v2043 = vpack.c.bf16 %v1867, %v1864
    %v2044 = vpack.c.bf16 %v1875, %v1872
    %v2045 = vpack.c.bf16 %v1883, %v1880
    %v2046 = vpack.c.bf16 %v1891, %v1888
    %v2047 = vpack.c.bf16 %v1899, %v1896
    %v2048 = vpack.c.bf16 %v1907, %v1904
    %v2049 = vpack.c.bf16 %v1915, %v1912
    %v2050 = vpack.c.bf16 %v1923, %v1920
    %v2051 = vpack.c.bf16 %v1931, %v1928
    %v2052 = vpack.c.bf16 %v1939, %v1936
    %v2053 = vpack.c.bf16 %v1947, %v1944
    %v2054 = vpack.c.bf16 %v1955, %v1952
    %v2055 = vpack.c.bf16 %v1963, %v1960
    %v2056 = vpack.c.bf16 %v1971, %v1968
    %v2057 = vpack.c.bf16 %v1979, %v1976
    %v2058 = vpack.c.bf16 %v1987, %v1984
    %v2059 = vpack.c.bf16 %v1995, %v1992
    %v2060 = vpack.c.bf16 %v2003, %v2000
    %v2061 = vpack.c.bf16 %v2011, %v2008
    %v2062 = vld [vmem:[%s4] sm:$0xff]
    %v2063 = vld [vmem:[%s4 + $0x8] sm:$0xff]
    %v2064 = vld [vmem:[%s4 + $0x10] sm:$0xff]
    %v2065 = vld [vmem:[%s4 + $0x18] sm:$0xff]
    %v2066 = vld [vmem:[%s4 + $0x20] sm:$0xff]
    %v2067 = vld [vmem:[%s4 + $0x28] sm:$0xff]
    %v2068 = vld [vmem:[%s4 + $0x30] sm:$0xff]
    %v2069 = vld [vmem:[%s4 + $0x38] sm:$0xff]
    %2071 = vset.pattern.permute.xlu0 0
    %2072 = vperm.xlu0 %2071, %v2062
    %v2073 = vpop.permute.xlu0 %2072
    %2076 = vset.pattern.permute.xlu0 0
    %2077 = vperm.xlu0 %2076, %v2063
    %v2078 = vpop.permute.xlu0 %2077
    %2081 = vset.pattern.permute.xlu0 0
    %2082 = vperm.xlu0 %2081, %v2064
    %v2083 = vpop.permute.xlu0 %2082
    %2086 = vset.pattern.permute.xlu0 0
    %2087 = vperm.xlu0 %2086, %v2065
    %v2088 = vpop.permute.xlu0 %2087
    %2091 = vset.pattern.permute.xlu0 0
    %2092 = vperm.xlu0 %2091, %v2066
    %v2093 = vpop.permute.xlu0 %2092
    %2096 = vset.pattern.permute.xlu0 0
    %2097 = vperm.xlu0 %2096, %v2067
    %v2098 = vpop.permute.xlu0 %2097
    %2101 = vset.pattern.permute.xlu0 0
    %2102 = vperm.xlu0 %2101, %v2068
    %v2103 = vpop.permute.xlu0 %2102
    %2106 = vset.pattern.permute.xlu0 0
    %2107 = vperm.xlu0 %2106, %v2069
    %v2108 = vpop.permute.xlu0 %2107
    %v2126 = vunpack.c.l.b16 %v2014
    %v2127 = vunpack.c.h.b16 %v2014
    %v2128 = vunpack.c.l.b16 %v2015
    %v2129 = vunpack.c.h.b16 %v2015
    %v2130 = vunpack.c.l.b16 %v2016
    %v2131 = vunpack.c.h.b16 %v2016
    %v2132 = vunpack.c.l.b16 %v2017
    %v2133 = vunpack.c.h.b16 %v2017
    %v2134 = vunpack.c.l.b16 %v2018
    %v2135 = vunpack.c.h.b16 %v2018
    %v2136 = vunpack.c.l.b16 %v2019
    %v2137 = vunpack.c.h.b16 %v2019
    %v2138 = vunpack.c.l.b16 %v2020
    %v2139 = vunpack.c.h.b16 %v2020
    %v2140 = vunpack.c.l.b16 %v2021
    %v2141 = vunpack.c.h.b16 %v2021
    %v2142 = vunpack.c.l.b16 %v2022
    %v2143 = vunpack.c.h.b16 %v2022
    %v2144 = vunpack.c.l.b16 %v2023
    %v2145 = vunpack.c.h.b16 %v2023
    %v2146 = vunpack.c.l.b16 %v2024
    %v2147 = vunpack.c.h.b16 %v2024
    %v2148 = vunpack.c.l.b16 %v2025
    %v2149 = vunpack.c.h.b16 %v2025
    %v2150 = vunpack.c.l.b16 %v2026
    %v2151 = vunpack.c.h.b16 %v2026
    %v2152 = vunpack.c.l.b16 %v2027
    %v2153 = vunpack.c.h.b16 %v2027
    %v2154 = vunpack.c.l.b16 %v2028
    %v2155 = vunpack.c.h.b16 %v2028
    %v2156 = vunpack.c.l.b16 %v2029
    %v2157 = vunpack.c.h.b16 %v2029
    %v2158 = vpack.c.b16 %v2130, %v2126
    %v2159 = vpack.c.b16 %v2131, %v2127
    %v2160 = vpack.c.b16 %v2132, %v2128
    %v2161 = vpack.c.b16 %v2133, %v2129
    %v2162 = vpack.c.b16 %v2138, %v2134
    %v2163 = vpack.c.b16 %v2139, %v2135
    %v2164 = vpack.c.b16 %v2140, %v2136
    %v2165 = vpack.c.b16 %v2141, %v2137
    %v2166 = vpack.c.b16 %v2146, %v2142
    %v2167 = vpack.c.b16 %v2147, %v2143
    %v2168 = vpack.c.b16 %v2148, %v2144
    %v2169 = vpack.c.b16 %v2149, %v2145
    %v2170 = vpack.c.b16 %v2154, %v2150
    %v2171 = vpack.c.b16 %v2155, %v2151
    %v2172 = vpack.c.b16 %v2156, %v2152
    %v2173 = vpack.c.b16 %v2157, %v2153
    %2190 = vmatprep.subr.bf16.mxu0 0
    %2191 = vmatpush1.bf16.msra.mxu0 %v2037
    %2192 = vmatprep.subr.bf16.mxu0 0
    %2193 = vmatpush1.bf16.msra.mxu0 %v2036
    %2194 = vmatprep.subr.bf16.mxu0 0
    %2195 = vmatpush1.bf16.msra.mxu0 %v2035
    %2196 = vmatprep.subr.bf16.mxu0 0
    %2197 = vmatpush1.bf16.msra.mxu0 %v2034
    %2198 = vmatprep.subr.bf16.mxu0 0
    %2199 = vmatpush1.bf16.msra.mxu0 %v2033
    %2200 = vmatprep.subr.bf16.mxu0 0
    %2201 = vmatpush1.bf16.msra.mxu0 %v2032
    %2202 = vmatprep.subr.bf16.mxu0 0
    %2203 = vmatpush1.bf16.msra.mxu0 %v2031
    %2204 = vmatprep.subr.bf16.mxu0 0
    %2205 = vmatpush1.bf16.msra.mxu0 %v2030
    %2206 = vmatprep.subr.bf16.mxu0 0
    %2207 = vmatpush2.bf16.msra.mxu0 %v2045
    %2208 = vmatprep.subr.bf16.mxu0 0
    %2209 = vmatpush2.bf16.msra.mxu0 %v2044
    %2210 = vmatprep.subr.bf16.mxu0 0
    %2211 = vmatpush2.bf16.msra.mxu0 %v2043
    %2212 = vmatprep.subr.bf16.mxu0 0
    %2213 = vmatpush2.bf16.msra.mxu0 %v2042
    %2214 = vmatprep.subr.bf16.mxu0 0
    %2215 = vmatpush2.bf16.msra.mxu0 %v2041
    %2216 = vmatprep.subr.bf16.mxu0 0
    %2217 = vmatpush2.bf16.msra.mxu0 %v2040
    %2218 = vmatprep.subr.bf16.mxu0 0
    %2219 = vmatpush2.bf16.msra.mxu0 %v2039
    %2220 = vmatprep.subr.bf16.mxu0 0
    %2221 = vmatpush2.bf16.msra.mxu0 %v2038
    %2222 = vmatprep.mubr.bf16.mxu0 %v2159
    %2223 = vmatmul.mubr.bf16.gmra.mxu0 %v2158
    %v2224 = vpop.f32.mrf.mxu0
    %v2225 = vadd.f32 %v2073, %v2224
    %v2226 = vpop.f32.mrf.mxu0
    %v2227 = vpop.f32.mrf.mxu0
    %v2228 = vadd.f32 %v2078, %v2227
    %v2229 = vpop.f32.mrf.mxu0
    %2230 = vmatprep.mubr.bf16.mxu0 %v2163
    %2231 = vmatmul.mubr.bf16.gmra.mxu0 %v2162
    %v2232 = vpop.f32.mrf.mxu0
    %v2233 = vadd.f32 %v2083, %v2232
    %v2234 = vpop.f32.mrf.mxu0
    %v2235 = vpop.f32.mrf.mxu0
    %v2236 = vadd.f32 %v2088, %v2235
    %v2237 = vpop.f32.mrf.mxu0
    %2238 = vmatprep.mubr.bf16.mxu0 %v2167
    %2239 = vmatmul.mubr.bf16.gmra.mxu0 %v2166
    %v2240 = vpop.f32.mrf.mxu0
    %v2241 = vadd.f32 %v2093, %v2240
    %v2242 = vpop.f32.mrf.mxu0
    %v2243 = vpop.f32.mrf.mxu0
    %v2244 = vadd.f32 %v2098, %v2243
    %v2245 = vpop.f32.mrf.mxu0
    %2246 = vmatprep.mubr.bf16.mxu0 %v2171
    %2247 = vmatmul.mubr.bf16.gmra.mxu0 %v2170
    %v2248 = vpop.f32.mrf.mxu0
    %v2249 = vadd.f32 %v2103, %v2248
    %v2250 = vpop.f32.mrf.mxu0
    %v2251 = vpop.f32.mrf.mxu0
    %v2252 = vadd.f32 %v2108, %v2251
    %v2253 = vpop.f32.mrf.mxu0
    %2254 = vdwg.mxu0
    %2255 = vmatprep.subr.bf16.mxu0 0
    %2256 = vmatpush1.bf16.msra.mxu0 %v2053
    %2257 = vmatprep.subr.bf16.mxu0 0
    %2258 = vmatpush1.bf16.msra.mxu0 %v2052
    %2259 = vmatprep.subr.bf16.mxu0 0
    %2260 = vmatpush1.bf16.msra.mxu0 %v2051
    %2261 = vmatprep.subr.bf16.mxu0 0
    %2262 = vmatpush1.bf16.msra.mxu0 %v2050
    %2263 = vmatprep.subr.bf16.mxu0 0
    %2264 = vmatpush1.bf16.msra.mxu0 %v2049
    %2265 = vmatprep.subr.bf16.mxu0 0
    %2266 = vmatpush1.bf16.msra.mxu0 %v2048
    %2267 = vmatprep.subr.bf16.mxu0 0
    %2268 = vmatpush1.bf16.msra.mxu0 %v2047
    %2269 = vmatprep.subr.bf16.mxu0 0
    %2270 = vmatpush1.bf16.msra.mxu0 %v2046
    %2271 = vmatprep.subr.bf16.mxu0 0
    %2272 = vmatpush2.bf16.msra.mxu0 %v2061
    %2273 = vmatprep.subr.bf16.mxu0 0
    %2274 = vmatpush2.bf16.msra.mxu0 %v2060
    %2275 = vmatprep.subr.bf16.mxu0 0
    %2276 = vmatpush2.bf16.msra.mxu0 %v2059
    %2277 = vmatprep.subr.bf16.mxu0 0
    %2278 = vmatpush2.bf16.msra.mxu0 %v2058
    %2279 = vmatprep.subr.bf16.mxu0 0
    %2280 = vmatpush2.bf16.msra.mxu0 %v2057
    %2281 = vmatprep.subr.bf16.mxu0 0
    %2282 = vmatpush2.bf16.msra.mxu0 %v2056
    %2283 = vmatprep.subr.bf16.mxu0 0
    %2284 = vmatpush2.bf16.msra.mxu0 %v2055
    %2285 = vmatprep.subr.bf16.mxu0 0
    %2286 = vmatpush2.bf16.msra.mxu0 %v2054
    %2287 = vmatprep.mubr.bf16.mxu0 %v2161
    %2288 = vmatmul.mubr.bf16.gmra.mxu0 %v2160
    %v2289 = vpop.f32.mrf.mxu0
    %v2290 = vadd.f32 %v2225, %v2289
    %v2291 = vpop.f32.mrf.mxu0
    %v2292 = vpop.f32.mrf.mxu0
    %v2293 = vadd.f32 %v2228, %v2292
    %v2294 = vpop.f32.mrf.mxu0
    %2295 = vmatprep.mubr.bf16.mxu0 %v2165
    %2296 = vmatmul.mubr.bf16.gmra.mxu0 %v2164
    %v2297 = vpop.f32.mrf.mxu0
    %v2298 = vadd.f32 %v2233, %v2297
    %v2299 = vpop.f32.mrf.mxu0
    %v2300 = vpop.f32.mrf.mxu0
    %v2301 = vadd.f32 %v2236, %v2300
    %v2302 = vpop.f32.mrf.mxu0
    %2303 = vmatprep.mubr.bf16.mxu0 %v2169
    %2304 = vmatmul.mubr.bf16.gmra.mxu0 %v2168
    %v2305 = vpop.f32.mrf.mxu0
    %v2306 = vadd.f32 %v2241, %v2305
    %v2307 = vpop.f32.mrf.mxu0
    %v2308 = vpop.f32.mrf.mxu0
    %v2309 = vadd.f32 %v2244, %v2308
    %v2310 = vpop.f32.mrf.mxu0
    %2311 = vmatprep.mubr.bf16.mxu0 %v2173
    %2312 = vmatmul.mubr.bf16.gmra.mxu0 %v2172
    %v2313 = vpop.f32.mrf.mxu0
    %v2314 = vadd.f32 %v2249, %v2313
    %v2315 = vpop.f32.mrf.mxu0
    %v2316 = vpop.f32.mrf.mxu0
    %v2317 = vadd.f32 %v2252, %v2316
    %v2318 = vpop.f32.mrf.mxu0
    %2319 = vdwg.mxu0
    %v2320 = vld [vmem:[%s5] sm:$0xff]
    %v2321 = vld [vmem:[%s5 + $0x8] sm:$0xff]
    %v2322 = vld [vmem:[%s5 + $0x10] sm:$0xff]
    %v2323 = vld [vmem:[%s5 + $0x18] sm:$0xff]
    %v2324 = vld [vmem:[%s5 + $0x20] sm:$0xff]
    %v2325 = vld [vmem:[%s5 + $0x28] sm:$0xff]
    %v2326 = vld [vmem:[%s5 + $0x30] sm:$0xff]
    %v2327 = vld [vmem:[%s5 + $0x38] sm:$0xff]
    %v2328 = vld [vmem:[%s5 + $0x40] sm:$0xff]
    %v2329 = vld [vmem:[%s5 + $0x48] sm:$0xff]
    %v2330 = vld [vmem:[%s5 + $0x50] sm:$0xff]
    %v2331 = vld [vmem:[%s5 + $0x58] sm:$0xff]
    %v2332 = vld [vmem:[%s5 + $0x60] sm:$0x3]
    %v2333 = vld [vmem:[%s6] sm:$0x1]
    %v2335 = vlaneseq
    %v2336 = vshrl.u32 %v2335, 7
    %v2337 = vsub.s32 0, %v2336
    %v2338 = vrot.slane %v2333, %v2337
    %vm2340 = vcmask 801792
    %v2342 = vsel %vm2340, %v2290, 0
    %v2345 = vsel %vm2340, %v2293, 0
    %v2348 = vsel %vm2340, %v2298, 0
    %v2351 = vsel %vm2340, %v2301, 0
    %v2354 = vsel %vm2340, %v2306, 0
    %v2357 = vsel %vm2340, %v2309, 0
    %v2360 = vsel %vm2340, %v2314, 0
    %v2363 = vsel %vm2340, %v2317, 0
    %vm2365 = vcmask 1041408
    %v2367 = vsel %vm2365, %v2332, 0
    %2369 = vmatprep.subr.mxu0 0.0
    %2370 = vmatpush1.msra.mxu0 0.0
    %2371 = vmatprep.subr.mxu0 0.0
    %2372 = vmatpush1.msra.mxu0 0.0
    %2373 = vmatprep.subr.mxu0 0.0
    %2374 = vmatpush1.msra.mxu0 0.0
    %2375 = vmatprep.subr.mxu0 0.0
    %2376 = vmatpush1.msra.mxu0 %v2367
    %2377 = vmatprep.subr.mxu0 0.0
    %2378 = vmatpush1.msra.mxu0 %v2331
    %2379 = vmatprep.subr.mxu0 0.0
    %2380 = vmatpush1.msra.mxu0 %v2330
    %2381 = vmatprep.subr.mxu0 0.0
    %2382 = vmatpush1.msra.mxu0 %v2329
    %2383 = vmatprep.subr.mxu0 0.0
    %2384 = vmatpush1.msra.mxu0 %v2328
    %2385 = vmatprep.subr.mxu0 0.0
    %2386 = vmatpush1.msra.mxu0 %v2327
    %2387 = vmatprep.subr.mxu0 0.0
    %2388 = vmatpush1.msra.mxu0 %v2326
    %2389 = vmatprep.subr.mxu0 0.0
    %2390 = vmatpush1.msra.mxu0 %v2325
    %2391 = vmatprep.subr.mxu0 0.0
    %2392 = vmatpush1.msra.mxu0 %v2324
    %2393 = vmatprep.subr.mxu0 0.0
    %2394 = vmatpush1.msra.mxu0 %v2323
    %2395 = vmatprep.subr.mxu0 0.0
    %2396 = vmatpush1.msra.mxu0 %v2322
    %2397 = vmatprep.subr.mxu0 0.0
    %2398 = vmatpush1.msra.mxu0 %v2321
    %2399 = vmatprep.subr.mxu0 0.0
    %2400 = vmatpush1.msra.mxu0 %v2320
    %2401 = vmatprep.subr.mxu0 0.0
    %2402 = vmatpush2.msra.mxu0 0.0
    %2403 = vmatprep.subr.mxu0 0.0
    %2404 = vmatpush2.msra.mxu0 0.0
    %2405 = vmatprep.subr.mxu0 0.0
    %2406 = vmatpush2.msra.mxu0 0.0
    %2407 = vmatprep.subr.mxu0 0.0
    %2408 = vmatpush2.msra.mxu0 0.0
    %2409 = vmatprep.subr.mxu0 0.0
    %2410 = vmatpush2.msra.mxu0 0.0
    %2411 = vmatprep.subr.mxu0 0.0
    %2412 = vmatpush2.msra.mxu0 0.0
    %2413 = vmatprep.subr.mxu0 0.0
    %2414 = vmatpush2.msra.mxu0 0.0
    %2415 = vmatprep.subr.mxu0 0.0
    %2416 = vmatpush2.msra.mxu0 0.0
    %2417 = vmatprep.subr.mxu0 0.0
    %2418 = vmatpush2.msra.mxu0 0.0
    %2419 = vmatprep.subr.mxu0 0.0
    %2420 = vmatpush2.msra.mxu0 0.0
    %2421 = vmatprep.subr.mxu0 0.0
    %2422 = vmatpush2.msra.mxu0 0.0
    %2423 = vmatprep.subr.mxu0 0.0
    %2424 = vmatpush2.msra.mxu0 0.0
    %2425 = vmatprep.subr.mxu0 0.0
    %2426 = vmatpush2.msra.mxu0 0.0
    %2427 = vmatprep.subr.mxu0 0.0
    %2428 = vmatpush2.msra.mxu0 0.0
    %2429 = vmatprep.subr.mxu0 0.0
    %2430 = vmatpush2.msra.mxu0 0.0
    %2431 = vmatprep.subr.mxu0 0.0
    %2432 = vmatpush2.msra.mxu0 0.0
    %2433 = vmatprep.mubr.f32.mxu0 0.0
    %2434 = vmatmul.mubr.f32.gmra.mxu0 %v2342
    %v2435 = vpop.f32.mrf.mxu0
    %v2436 = vadd.f32 %v2338, %v2435
    %v2437 = vpop.f32.mrf.mxu0
    %2438 = vmatprep.mubr.f32.mxu0 0.0
    %2439 = vmatmul.mubr.f32.gmra.mxu0 %v2345
    %v2440 = vpop.f32.mrf.mxu0
    %v2441 = vadd.f32 %v2338, %v2440
    %v2442 = vpop.f32.mrf.mxu0
    %2443 = vmatprep.mubr.f32.mxu0 0.0
    %2444 = vmatmul.mubr.f32.gmra.mxu0 %v2348
    %v2445 = vpop.f32.mrf.mxu0
    %v2446 = vadd.f32 %v2338, %v2445
    %v2447 = vpop.f32.mrf.mxu0
    %2448 = vmatprep.mubr.f32.mxu0 0.0
    %2449 = vmatmul.mubr.f32.gmra.mxu0 %v2351
    %v2450 = vpop.f32.mrf.mxu0
    %v2451 = vadd.f32 %v2338, %v2450
    %v2452 = vpop.f32.mrf.mxu0
    %2453 = vmatprep.mubr.f32.mxu0 0.0
    %2454 = vmatmul.mubr.f32.gmra.mxu0 %v2354
    %v2455 = vpop.f32.mrf.mxu0
    %v2456 = vadd.f32 %v2338, %v2455
    %v2457 = vpop.f32.mrf.mxu0
    %2458 = vmatprep.mubr.f32.mxu0 0.0
    %2459 = vmatmul.mubr.f32.gmra.mxu0 %v2357
    %v2460 = vpop.f32.mrf.mxu0
    %v2461 = vadd.f32 %v2338, %v2460
    %v2462 = vpop.f32.mrf.mxu0
    %2463 = vmatprep.mubr.f32.mxu0 0.0
    %2464 = vmatmul.mubr.f32.gmra.mxu0 %v2360
    %v2465 = vpop.f32.mrf.mxu0
    %v2466 = vadd.f32 %v2338, %v2465
    %v2467 = vpop.f32.mrf.mxu0
    %2468 = vmatprep.mubr.f32.mxu0 0.0
    %2469 = vmatmul.mubr.f32.gmra.mxu0 %v2363
    %v2470 = vpop.f32.mrf.mxu0
    %v2471 = vadd.f32 %v2338, %v2470
    %v2472 = vpop.f32.mrf.mxu0
    %2473 = vdwg.mxu0
    %vm2474 = vcmask 523264
    %2475 = vst.msk [vmem:[#allocation2] sm:$0xff] %vm2474, %v2436
    %2476 = vst.msk [vmem:[#allocation2 + $0x8] sm:$0xff] %vm2474, %v2441
    %2477 = vst.msk [vmem:[#allocation2 + $0x10] sm:$0xff] %vm2474, %v2446
    %2478 = vst.msk [vmem:[#allocation2 + $0x18] sm:$0xff] %vm2474, %v2451
    %2479 = vst.msk [vmem:[#allocation2 + $0x20] sm:$0xff] %vm2474, %v2456
    %2480 = vst.msk [vmem:[#allocation2 + $0x28] sm:$0xff] %vm2474, %v2461
    %2481 = vst.msk [vmem:[#allocation2 + $0x30] sm:$0xff] %vm2474, %v2466
    %2482 = vst.msk [vmem:[#allocation2 + $0x38] sm:$0xff] %vm2474, %v2471
    // Predicated region
    $region30: #{tpu_custom_call.1} parent=1 // pred_check
      _
    $region31: #{tpu_custom_call.1} parent=1 // pred_check_branch
      %2484 = sbr.rel (0) target = $region33
    $region32: #{tpu_custom_call.1} parent=1 // pred_region
      %s2486 = ssub.s32 1024, 1024
      %2487 = vsyncadd [#allocation3], %s2486
      %s2488 = sshll.u32 [#allocation2], 4
      %s2489 = int_to_ptr.vmem [resolvable:$true] %s2488
      %2494 = dma.vmem_to_hbm [thread:$0]  %s2489, 1024, %s7, [#allocation3], 128, 128, 8
    $region33: #{tpu_custom_call.1} parent=1 // pred_fallthru
      _
    // Predicated region
    $region34: #{tpu_custom_call.1} parent=1 // pred_check
      _
    $region35: #{tpu_custom_call.1} parent=1 // pred_check_branch
      %2496 = sbr.rel (0) target = $region37
    $region36: #{tpu_custom_call.1} parent=1 // pred_region
      %2497 = dma.done [#allocation3], 1024
    $region37: #{tpu_custom_call.1} parent=1 // pred_fallthru
      _
    %2498 = vsyncpa [#allocation3], 1

</llo_original>
